<compile_context>
chip_gen: v5e
topology: v5e:2x2
jax: 0.10.0
libtpu: 0.0.40
codegen_flags: <defaults>
</compile_context>

<pallas_src>
import functools

import jax
import jax.numpy as jnp
from jax.experimental import pallas as pl
from jax.experimental.pallas import tpu as pltpu


def _striped_conv_stats_kernel(xp_ref, w1_ref, w2_ref,
                               y2_ref, stats_ref, *, C, H, W, K):
    """One batch image per grid step.

    xp_ref   : (C, H+2p, W+2p) VMEM  zero-padded input image (NCHW slab)
    w1_ref   : (C*C*K,)        SMEM  (1,K)-conv weights, idx = (co*C + ci)*K + dx
    w2_ref   : (C*C*K,)        SMEM  (K,1)-conv weights, idx = (co*C + ci)*K + dy
    y2_ref   : (C, H, W)       VMEM  pre-BN activations (output)
    stats_ref: (C, 2)          VMEM  per-image per-channel [sum, sum_of_squares]
    """
    # Load each channel plane once; the K shifted taps are static lane slices.
    x_ch = [xp_ref[ci] for ci in range(C)]
    x_taps = [[x_ch[ci][:, dx:dx + W] for dx in range(K)] for ci in range(C)]

    # ---- conv1: (1,K) along W as VPU broadcast-FMAs (f32 accumulation). ----
    y1 = []
    for co in range(C):
        acc = None
        for ci in range(C):
            for dx in range(K):
                term = x_taps[ci][dx] * w1_ref[(co * C + ci) * K + dx]
                acc = term if acc is None else acc + term
        y1.append(acc)                        # (H+2p, W); padded rows are zero

    # ---- conv2: (K,1) along H; the zero rows of y1 are exactly its padding. -
    y1_taps = [[y1[ci][dy:dy + H, :] for dy in range(K)] for ci in range(C)]
    y2 = []
    for co in range(C):
        acc = None
        for ci in range(C):
            for dy in range(K):
                term = y1_taps[ci][dy] * w2_ref[(co * C + ci) * K + dy]
                acc = term if acc is None else acc + term
        y2.append(acc)                        # (H, W) float32

    y2_all = jnp.stack(y2)                    # (C, H, W)
    # Kept f32 for BN numerical accuracy (tiny tensor; HBM traffic negligible).
    y2_ref[...] = y2_all.astype(y2_ref.dtype)

    # ---- fused BatchNorm statistics: one pass, sum and sum-of-squares. -----
    ssum = jnp.sum(jnp.sum(y2_all, axis=2), axis=1, keepdims=True)        # (C,1)
    ssq = jnp.sum(jnp.sum(y2_all * y2_all, axis=2), axis=1, keepdims=True)  # (C,1)
    stats_ref[...] = jnp.concatenate([ssum, ssq], axis=1)                 # (C,2)


def _bn_relu_kernel(y_ref, scale_ref, shift_ref, o_ref):
    """Lane-dense normalize + ReLU over the whole batch in one shot.

    y_ref    : (N*C, H*W) VMEM  pre-BN activations
    scale_ref: (N*C, 1)   VMEM  gamma * rsqrt(var + eps)   (per-row)
    shift_ref: (N*C, 1)   VMEM  beta - mean * scale        (per-row)
    o_ref    : (N*C, H*W) VMEM  output
    """
    y = y_ref[...]
    o_ref[...] = jnp.maximum(y * scale_ref[...] + shift_ref[...],
                             0.0).astype(o_ref.dtype)


def double_conv_striped(x_nchw, w1_torch, w2_torch, gamma, beta, eps=1e-5):
    """NCHW in / NCHW out, PyTorch-layout weights (OIHW). BN in training mode."""
    N, C, H, W = x_nchw.shape
    K = w1_torch.shape[-1]
    p = K // 2
    Hp, Wp = H + 2 * p, W + 2 * p
    HW = H * W

    # Zero-pad spatial dims once; layout stays NCHW (spatial on sublanes/lanes).
    xp = jnp.pad(x_nchw, ((0, 0), (0, 0), (p, p), (p, p)))

    # (Cout, Cin, 1, K) / (Cout, Cin, K, 1) -> flat scalar tables for SMEM
    # (1-D SMEM pads to next_pow2(4*C*C*K) bytes instead of [8,128]-word tiles).
    w1 = w1_torch[:, :, 0, :].reshape(C * C * K).astype(jnp.float32)
    w2 = w2_torch[:, :, :, 0].reshape(C * C * K).astype(jnp.float32)

    conv_cparams = pltpu.CompilerParams(
        dimension_semantics=("parallel",),          # megacore split on v7x
        vmem_limit_bytes=32 * 1024 * 1024)

    # ---- pass 1: striped convs + fused BN statistics, grid over batch ------
    conv_kernel = functools.partial(_striped_conv_stats_kernel,
                                    C=C, H=H, W=W, K=K)
    y2, stats = pl.pallas_call(
        conv_kernel,
        grid=(N,),
        out_shape=(jax.ShapeDtypeStruct((N, C, H, W), jnp.float32),
                   jax.ShapeDtypeStruct((N, C, 2), jnp.float32)),
        in_specs=[
            pl.BlockSpec((None, C, Hp, Wp), lambda n: (n, 0, 0, 0)),
            pl.BlockSpec(memory_space=pltpu.MemorySpace.SMEM),
            pl.BlockSpec(memory_space=pltpu.MemorySpace.SMEM),
        ],
        out_specs=(
            pl.BlockSpec((None, C, H, W), lambda n: (n, 0, 0, 0)),
            pl.BlockSpec((None, C, 2), lambda n: (n, 0, 0)),
        ),
        compiler_params=conv_cparams,
    )(xp, w1, w2)

    # ---- tiny cross-batch reduction of BN partials (a few dozen floats) ----
    count = N * H * W
    mean = jnp.sum(stats[:, :, 0], axis=0) / count               # (C,)
    mean_sq = jnp.sum(stats[:, :, 1], axis=0) / count            # (C,)
    var = jnp.maximum(mean_sq - mean * mean, 0.0)                 # biased var
    scale = gamma.astype(jnp.float32) * jax.lax.rsqrt(var + eps)
    shift = beta.astype(jnp.float32) - mean * scale
    # Per-row (image x channel) scale/shift for the flattened (N*C, HW) slab.
    scale_full = jnp.broadcast_to(scale.reshape(1, C, 1), (N, C, 1)).reshape(N * C, 1)
    shift_full = jnp.broadcast_to(shift.reshape(1, C, 1), (N, C, 1)).reshape(N * C, 1)

    # ---- pass 2: single-shot lane-dense BN scale/shift + ReLU ---------------
    out = pl.pallas_call(
        _bn_relu_kernel,
        grid=(1,),
        out_shape=jax.ShapeDtypeStruct((N * C, HW), x_nchw.dtype),
        in_specs=[
            pl.BlockSpec((N * C, HW), lambda i: (0, 0)),
            pl.BlockSpec((N * C, 1), lambda i: (0, 0)),
            pl.BlockSpec((N * C, 1), lambda i: (0, 0)),
        ],
        out_specs=pl.BlockSpec((N * C, HW), lambda i: (0, 0)),
        compiler_params=pltpu.CompilerParams(
            dimension_semantics=("arbitrary",),
            vmem_limit_bytes=32 * 1024 * 1024),
    )(y2.reshape(N * C, HW), scale_full, shift_full)

    return out.reshape(N, C, H, W)


def _reference(x, w1_t, w2_t, gamma, beta, eps=1e-5):
    """Pure-JAX reference mirroring the PyTorch forward (NCHW / OIHW)."""
    K = w1_t.shape[-1]
    p = K // 2
    hi = jax.lax.Precision.HIGHEST
    y1 = jax.lax.conv_general_dilated(
        x, w1_t, window_strides=(1, 1), padding=((0, 0), (p, p)),
        dimension_numbers=("NCHW", "OIHW", "NCHW"), precision=hi)
    y2 = jax.lax.conv_general_dilated(
        y1, w2_t, window_strides=(1, 1), padding=((p, p), (0, 0)),
        dimension_numbers=("NCHW", "OIHW", "NCHW"), precision=hi)
    mean = jnp.mean(y2, axis=(0, 2, 3), keepdims=True)
    var = jnp.mean((y2 - mean) ** 2, axis=(0, 2, 3), keepdims=True)
    xn = (y2 - mean) / jnp.sqrt(var + eps)
    y = xn * gamma.reshape(1, -1, 1, 1) + beta.reshape(1, -1, 1, 1)
    return jnp.maximum(y, 0.0)


if __name__ == "__main__":
    N, C, H, W, K = 2, 4, 16, 16, 3   # in_channels == out_channels == 4

    key = jax.random.PRNGKey(0)
    kx, k1, k2 = jax.random.split(key, 3)

    x = jax.random.normal(kx, (N, C, H, W), jnp.float32)
    # Deterministic synthetic weights (PyTorch OIHW layout), bias=False convs.
    w1_t = jax.random.normal(k1, (C, C, 1, K), jnp.float32) * 0.2
    w2_t = jax.random.normal(k2, (C, C, K, 1), jnp.float32) * 0.2
    # BatchNorm2d default init: weight=1, bias=0 (freshly constructed module).
    gamma = jnp.ones((C,), jnp.float32)
    beta = jnp.zeros((C,), jnp.float32)

    fwd = jax.jit(double_conv_striped)
    out = jax.block_until_ready(fwd(x, w1_t, w2_t, gamma, beta))

    ref = jax.block_until_ready(_reference(x, w1_t, w2_t, gamma, beta))
    assert out.shape == (N, C, H, W)
    assert jnp.allclose(out, ref, atol=1e-4, rtol=1e-4), "mismatch vs reference"

    print("KERNEL_OK")
</pallas_src>

<mosaic_0001>
module attributes {stable_mosaic.version = 11 : i64} {
  func.func @_striped_conv_stats_kernel(%arg0: i32, %arg1: memref<1x4x18x18xf32, #tpu.memory_space<vmem>>, %arg2: memref<48xf32, #tpu.memory_space<smem>>, %arg3: memref<48xf32, #tpu.memory_space<smem>>, %arg4: memref<1x4x16x16xf32, #tpu.memory_space<vmem>>, %arg5: memref<1x4x2xf32, #tpu.memory_space<vmem>>) attributes {dimension_semantics = [#tpu.dimension_semantics<parallel>], iteration_bounds = array<i64: 2>, scalar_prefetch = 0 : i64, scratch_operands = 0 : i64, tpu.core_type = #tpu.core_type<tc>, window_params = [{transform_indices = @transform_0, window_bounds = array<i64: 1, 4, 18, 18>}, {transform_indices = @transform_1, window_bounds = array<i64: 48>}, {transform_indices = @transform_2, window_bounds = array<i64: 48>}, {transform_indices = @transform_3, window_bounds = array<i64: 1, 4, 16, 16>}, {transform_indices = @transform_4, window_bounds = array<i64: 1, 4, 2>}]} {
    %c0 = arith.constant 0 : index
    %c0_0 = arith.constant 0 : index
    %c0_1 = arith.constant 0 : index
    %c0_2 = arith.constant 0 : index
    %0 = vector.load %arg1[%c0, %c0_0, %c0_1, %c0_2] : memref<1x4x18x18xf32, #tpu.memory_space<vmem>>, vector<1x1x18x18xf32>
    %1 = vector.shape_cast %0 : vector<1x1x18x18xf32> to vector<18x18xf32>
    %c0_3 = arith.constant 0 : index
    %c1 = arith.constant 1 : index
    %c0_4 = arith.constant 0 : index
    %c0_5 = arith.constant 0 : index
    %2 = vector.load %arg1[%c0_3, %c1, %c0_4, %c0_5] : memref<1x4x18x18xf32, #tpu.memory_space<vmem>>, vector<1x1x18x18xf32>
    %3 = vector.shape_cast %2 : vector<1x1x18x18xf32> to vector<18x18xf32>
    %c0_6 = arith.constant 0 : index
    %c2 = arith.constant 2 : index
    %c0_7 = arith.constant 0 : index
    %c0_8 = arith.constant 0 : index
    %4 = vector.load %arg1[%c0_6, %c2, %c0_7, %c0_8] : memref<1x4x18x18xf32, #tpu.memory_space<vmem>>, vector<1x1x18x18xf32>
    %5 = vector.shape_cast %4 : vector<1x1x18x18xf32> to vector<18x18xf32>
    %c0_9 = arith.constant 0 : index
    %c3 = arith.constant 3 : index
    %c0_10 = arith.constant 0 : index
    %c0_11 = arith.constant 0 : index
    %6 = vector.load %arg1[%c0_9, %c3, %c0_10, %c0_11] : memref<1x4x18x18xf32, #tpu.memory_space<vmem>>, vector<1x1x18x18xf32>
    %7 = vector.shape_cast %6 : vector<1x1x18x18xf32> to vector<18x18xf32>
    %8 = vector.extract_strided_slice %1 {offsets = [0, 0], sizes = [18, 16], strides = [1, 1]} : vector<18x18xf32> to vector<18x16xf32>
    %9 = vector.extract_strided_slice %1 {offsets = [0, 1], sizes = [18, 16], strides = [1, 1]} : vector<18x18xf32> to vector<18x16xf32>
    %10 = vector.extract_strided_slice %1 {offsets = [0, 2], sizes = [18, 16], strides = [1, 1]} : vector<18x18xf32> to vector<18x16xf32>
    %11 = vector.extract_strided_slice %3 {offsets = [0, 0], sizes = [18, 16], strides = [1, 1]} : vector<18x18xf32> to vector<18x16xf32>
    %12 = vector.extract_strided_slice %3 {offsets = [0, 1], sizes = [18, 16], strides = [1, 1]} : vector<18x18xf32> to vector<18x16xf32>
    %13 = vector.extract_strided_slice %3 {offsets = [0, 2], sizes = [18, 16], strides = [1, 1]} : vector<18x18xf32> to vector<18x16xf32>
    %14 = vector.extract_strided_slice %5 {offsets = [0, 0], sizes = [18, 16], strides = [1, 1]} : vector<18x18xf32> to vector<18x16xf32>
    %15 = vector.extract_strided_slice %5 {offsets = [0, 1], sizes = [18, 16], strides = [1, 1]} : vector<18x18xf32> to vector<18x16xf32>
    %16 = vector.extract_strided_slice %5 {offsets = [0, 2], sizes = [18, 16], strides = [1, 1]} : vector<18x18xf32> to vector<18x16xf32>
    %17 = vector.extract_strided_slice %7 {offsets = [0, 0], sizes = [18, 16], strides = [1, 1]} : vector<18x18xf32> to vector<18x16xf32>
    %18 = vector.extract_strided_slice %7 {offsets = [0, 1], sizes = [18, 16], strides = [1, 1]} : vector<18x18xf32> to vector<18x16xf32>
    %19 = vector.extract_strided_slice %7 {offsets = [0, 2], sizes = [18, 16], strides = [1, 1]} : vector<18x18xf32> to vector<18x16xf32>
    %c0_12 = arith.constant 0 : index
    %20 = memref.load %arg2[%c0_12] : memref<48xf32, #tpu.memory_space<smem>>
    %21 = vector.broadcast %20 : f32 to vector<18x16xf32>
    %22 = arith.mulf %8, %21 : vector<18x16xf32>
    %c1_13 = arith.constant 1 : index
    %23 = memref.load %arg2[%c1_13] : memref<48xf32, #tpu.memory_space<smem>>
    %24 = vector.broadcast %23 : f32 to vector<18x16xf32>
    %25 = arith.mulf %9, %24 : vector<18x16xf32>
    %26 = arith.addf %22, %25 : vector<18x16xf32>
    %c2_14 = arith.constant 2 : index
    %27 = memref.load %arg2[%c2_14] : memref<48xf32, #tpu.memory_space<smem>>
    %28 = vector.broadcast %27 : f32 to vector<18x16xf32>
    %29 = arith.mulf %10, %28 : vector<18x16xf32>
    %30 = arith.addf %26, %29 : vector<18x16xf32>
    %c3_15 = arith.constant 3 : index
    %31 = memref.load %arg2[%c3_15] : memref<48xf32, #tpu.memory_space<smem>>
    %32 = vector.broadcast %31 : f32 to vector<18x16xf32>
    %33 = arith.mulf %11, %32 : vector<18x16xf32>
    %34 = arith.addf %30, %33 : vector<18x16xf32>
    %c4 = arith.constant 4 : index
    %35 = memref.load %arg2[%c4] : memref<48xf32, #tpu.memory_space<smem>>
    %36 = vector.broadcast %35 : f32 to vector<18x16xf32>
    %37 = arith.mulf %12, %36 : vector<18x16xf32>
    %38 = arith.addf %34, %37 : vector<18x16xf32>
    %c5 = arith.constant 5 : index
    %39 = memref.load %arg2[%c5] : memref<48xf32, #tpu.memory_space<smem>>
    %40 = vector.broadcast %39 : f32 to vector<18x16xf32>
    %41 = arith.mulf %13, %40 : vector<18x16xf32>
    %42 = arith.addf %38, %41 : vector<18x16xf32>
    %c6 = arith.constant 6 : index
    %43 = memref.load %arg2[%c6] : memref<48xf32, #tpu.memory_space<smem>>
    %44 = vector.broadcast %43 : f32 to vector<18x16xf32>
    %45 = arith.mulf %14, %44 : vector<18x16xf32>
    %46 = arith.addf %42, %45 : vector<18x16xf32>
    %c7 = arith.constant 7 : index
    %47 = memref.load %arg2[%c7] : memref<48xf32, #tpu.memory_space<smem>>
    %48 = vector.broadcast %47 : f32 to vector<18x16xf32>
    %49 = arith.mulf %15, %48 : vector<18x16xf32>
    %50 = arith.addf %46, %49 : vector<18x16xf32>
    %c8 = arith.constant 8 : index
    %51 = memref.load %arg2[%c8] : memref<48xf32, #tpu.memory_space<smem>>
    %52 = vector.broadcast %51 : f32 to vector<18x16xf32>
    %53 = arith.mulf %16, %52 : vector<18x16xf32>
    %54 = arith.addf %50, %53 : vector<18x16xf32>
    %c9 = arith.constant 9 : index
    %55 = memref.load %arg2[%c9] : memref<48xf32, #tpu.memory_space<smem>>
    %56 = vector.broadcast %55 : f32 to vector<18x16xf32>
    %57 = arith.mulf %17, %56 : vector<18x16xf32>
    %58 = arith.addf %54, %57 : vector<18x16xf32>
    %c10 = arith.constant 10 : index
    %59 = memref.load %arg2[%c10] : memref<48xf32, #tpu.memory_space<smem>>
    %60 = vector.broadcast %59 : f32 to vector<18x16xf32>
    %61 = arith.mulf %18, %60 : vector<18x16xf32>
    %62 = arith.addf %58, %61 : vector<18x16xf32>
    %c11 = arith.constant 11 : index
    %63 = memref.load %arg2[%c11] : memref<48xf32, #tpu.memory_space<smem>>
    %64 = vector.broadcast %63 : f32 to vector<18x16xf32>
    %65 = arith.mulf %19, %64 : vector<18x16xf32>
    %66 = arith.addf %62, %65 : vector<18x16xf32>
    %c12 = arith.constant 12 : index
    %67 = memref.load %arg2[%c12] : memref<48xf32, #tpu.memory_space<smem>>
    %68 = vector.broadcast %67 : f32 to vector<18x16xf32>
    %69 = arith.mulf %8, %68 : vector<18x16xf32>
    %c13 = arith.constant 13 : index
    %70 = memref.load %arg2[%c13] : memref<48xf32, #tpu.memory_space<smem>>
    %71 = vector.broadcast %70 : f32 to vector<18x16xf32>
    %72 = arith.mulf %9, %71 : vector<18x16xf32>
    %73 = arith.addf %69, %72 : vector<18x16xf32>
    %c14 = arith.constant 14 : index
    %74 = memref.load %arg2[%c14] : memref<48xf32, #tpu.memory_space<smem>>
    %75 = vector.broadcast %74 : f32 to vector<18x16xf32>
    %76 = arith.mulf %10, %75 : vector<18x16xf32>
    %77 = arith.addf %73, %76 : vector<18x16xf32>
    %c15 = arith.constant 15 : index
    %78 = memref.load %arg2[%c15] : memref<48xf32, #tpu.memory_space<smem>>
    %79 = vector.broadcast %78 : f32 to vector<18x16xf32>
    %80 = arith.mulf %11, %79 : vector<18x16xf32>
    %81 = arith.addf %77, %80 : vector<18x16xf32>
    %c16 = arith.constant 16 : index
    %82 = memref.load %arg2[%c16] : memref<48xf32, #tpu.memory_space<smem>>
    %83 = vector.broadcast %82 : f32 to vector<18x16xf32>
    %84 = arith.mulf %12, %83 : vector<18x16xf32>
    %85 = arith.addf %81, %84 : vector<18x16xf32>
    %c17 = arith.constant 17 : index
    %86 = memref.load %arg2[%c17] : memref<48xf32, #tpu.memory_space<smem>>
    %87 = vector.broadcast %86 : f32 to vector<18x16xf32>
    %88 = arith.mulf %13, %87 : vector<18x16xf32>
    %89 = arith.addf %85, %88 : vector<18x16xf32>
    %c18 = arith.constant 18 : index
    %90 = memref.load %arg2[%c18] : memref<48xf32, #tpu.memory_space<smem>>
    %91 = vector.broadcast %90 : f32 to vector<18x16xf32>
    %92 = arith.mulf %14, %91 : vector<18x16xf32>
    %93 = arith.addf %89, %92 : vector<18x16xf32>
    %c19 = arith.constant 19 : index
    %94 = memref.load %arg2[%c19] : memref<48xf32, #tpu.memory_space<smem>>
    %95 = vector.broadcast %94 : f32 to vector<18x16xf32>
    %96 = arith.mulf %15, %95 : vector<18x16xf32>
    %97 = arith.addf %93, %96 : vector<18x16xf32>
    %c20 = arith.constant 20 : index
    %98 = memref.load %arg2[%c20] : memref<48xf32, #tpu.memory_space<smem>>
    %99 = vector.broadcast %98 : f32 to vector<18x16xf32>
    %100 = arith.mulf %16, %99 : vector<18x16xf32>
    %101 = arith.addf %97, %100 : vector<18x16xf32>
    %c21 = arith.constant 21 : index
    %102 = memref.load %arg2[%c21] : memref<48xf32, #tpu.memory_space<smem>>
    %103 = vector.broadcast %102 : f32 to vector<18x16xf32>
    %104 = arith.mulf %17, %103 : vector<18x16xf32>
    %105 = arith.addf %101, %104 : vector<18x16xf32>
    %c22 = arith.constant 22 : index
    %106 = memref.load %arg2[%c22] : memref<48xf32, #tpu.memory_space<smem>>
    %107 = vector.broadcast %106 : f32 to vector<18x16xf32>
    %108 = arith.mulf %18, %107 : vector<18x16xf32>
    %109 = arith.addf %105, %108 : vector<18x16xf32>
    %c23 = arith.constant 23 : index
    %110 = memref.load %arg2[%c23] : memref<48xf32, #tpu.memory_space<smem>>
    %111 = vector.broadcast %110 : f32 to vector<18x16xf32>
    %112 = arith.mulf %19, %111 : vector<18x16xf32>
    %113 = arith.addf %109, %112 : vector<18x16xf32>
    %c24 = arith.constant 24 : index
    %114 = memref.load %arg2[%c24] : memref<48xf32, #tpu.memory_space<smem>>
    %115 = vector.broadcast %114 : f32 to vector<18x16xf32>
    %116 = arith.mulf %8, %115 : vector<18x16xf32>
    %c25 = arith.constant 25 : index
    %117 = memref.load %arg2[%c25] : memref<48xf32, #tpu.memory_space<smem>>
    %118 = vector.broadcast %117 : f32 to vector<18x16xf32>
    %119 = arith.mulf %9, %118 : vector<18x16xf32>
    %120 = arith.addf %116, %119 : vector<18x16xf32>
    %c26 = arith.constant 26 : index
    %121 = memref.load %arg2[%c26] : memref<48xf32, #tpu.memory_space<smem>>
    %122 = vector.broadcast %121 : f32 to vector<18x16xf32>
    %123 = arith.mulf %10, %122 : vector<18x16xf32>
    %124 = arith.addf %120, %123 : vector<18x16xf32>
    %c27 = arith.constant 27 : index
    %125 = memref.load %arg2[%c27] : memref<48xf32, #tpu.memory_space<smem>>
    %126 = vector.broadcast %125 : f32 to vector<18x16xf32>
    %127 = arith.mulf %11, %126 : vector<18x16xf32>
    %128 = arith.addf %124, %127 : vector<18x16xf32>
    %c28 = arith.constant 28 : index
    %129 = memref.load %arg2[%c28] : memref<48xf32, #tpu.memory_space<smem>>
    %130 = vector.broadcast %129 : f32 to vector<18x16xf32>
    %131 = arith.mulf %12, %130 : vector<18x16xf32>
    %132 = arith.addf %128, %131 : vector<18x16xf32>
    %c29 = arith.constant 29 : index
    %133 = memref.load %arg2[%c29] : memref<48xf32, #tpu.memory_space<smem>>
    %134 = vector.broadcast %133 : f32 to vector<18x16xf32>
    %135 = arith.mulf %13, %134 : vector<18x16xf32>
    %136 = arith.addf %132, %135 : vector<18x16xf32>
    %c30 = arith.constant 30 : index
    %137 = memref.load %arg2[%c30] : memref<48xf32, #tpu.memory_space<smem>>
    %138 = vector.broadcast %137 : f32 to vector<18x16xf32>
    %139 = arith.mulf %14, %138 : vector<18x16xf32>
    %140 = arith.addf %136, %139 : vector<18x16xf32>
    %c31 = arith.constant 31 : index
    %141 = memref.load %arg2[%c31] : memref<48xf32, #tpu.memory_space<smem>>
    %142 = vector.broadcast %141 : f32 to vector<18x16xf32>
    %143 = arith.mulf %15, %142 : vector<18x16xf32>
    %144 = arith.addf %140, %143 : vector<18x16xf32>
    %c32 = arith.constant 32 : index
    %145 = memref.load %arg2[%c32] : memref<48xf32, #tpu.memory_space<smem>>
    %146 = vector.broadcast %145 : f32 to vector<18x16xf32>
    %147 = arith.mulf %16, %146 : vector<18x16xf32>
    %148 = arith.addf %144, %147 : vector<18x16xf32>
    %c33 = arith.constant 33 : index
    %149 = memref.load %arg2[%c33] : memref<48xf32, #tpu.memory_space<smem>>
    %150 = vector.broadcast %149 : f32 to vector<18x16xf32>
    %151 = arith.mulf %17, %150 : vector<18x16xf32>
    %152 = arith.addf %148, %151 : vector<18x16xf32>
    %c34 = arith.constant 34 : index
    %153 = memref.load %arg2[%c34] : memref<48xf32, #tpu.memory_space<smem>>
    %154 = vector.broadcast %153 : f32 to vector<18x16xf32>
    %155 = arith.mulf %18, %154 : vector<18x16xf32>
    %156 = arith.addf %152, %155 : vector<18x16xf32>
    %c35 = arith.constant 35 : index
    %157 = memref.load %arg2[%c35] : memref<48xf32, #tpu.memory_space<smem>>
    %158 = vector.broadcast %157 : f32 to vector<18x16xf32>
    %159 = arith.mulf %19, %158 : vector<18x16xf32>
    %160 = arith.addf %156, %159 : vector<18x16xf32>
    %c36 = arith.constant 36 : index
    %161 = memref.load %arg2[%c36] : memref<48xf32, #tpu.memory_space<smem>>
    %162 = vector.broadcast %161 : f32 to vector<18x16xf32>
    %163 = arith.mulf %8, %162 : vector<18x16xf32>
    %c37 = arith.constant 37 : index
    %164 = memref.load %arg2[%c37] : memref<48xf32, #tpu.memory_space<smem>>
    %165 = vector.broadcast %164 : f32 to vector<18x16xf32>
    %166 = arith.mulf %9, %165 : vector<18x16xf32>
    %167 = arith.addf %163, %166 : vector<18x16xf32>
    %c38 = arith.constant 38 : index
    %168 = memref.load %arg2[%c38] : memref<48xf32, #tpu.memory_space<smem>>
    %169 = vector.broadcast %168 : f32 to vector<18x16xf32>
    %170 = arith.mulf %10, %169 : vector<18x16xf32>
    %171 = arith.addf %167, %170 : vector<18x16xf32>
    %c39 = arith.constant 39 : index
    %172 = memref.load %arg2[%c39] : memref<48xf32, #tpu.memory_space<smem>>
    %173 = vector.broadcast %172 : f32 to vector<18x16xf32>
    %174 = arith.mulf %11, %173 : vector<18x16xf32>
    %175 = arith.addf %171, %174 : vector<18x16xf32>
    %c40 = arith.constant 40 : index
    %176 = memref.load %arg2[%c40] : memref<48xf32, #tpu.memory_space<smem>>
    %177 = vector.broadcast %176 : f32 to vector<18x16xf32>
    %178 = arith.mulf %12, %177 : vector<18x16xf32>
    %179 = arith.addf %175, %178 : vector<18x16xf32>
    %c41 = arith.constant 41 : index
    %180 = memref.load %arg2[%c41] : memref<48xf32, #tpu.memory_space<smem>>
    %181 = vector.broadcast %180 : f32 to vector<18x16xf32>
    %182 = arith.mulf %13, %181 : vector<18x16xf32>
    %183 = arith.addf %179, %182 : vector<18x16xf32>
    %c42 = arith.constant 42 : index
    %184 = memref.load %arg2[%c42] : memref<48xf32, #tpu.memory_space<smem>>
    %185 = vector.broadcast %184 : f32 to vector<18x16xf32>
    %186 = arith.mulf %14, %185 : vector<18x16xf32>
    %187 = arith.addf %183, %186 : vector<18x16xf32>
    %c43 = arith.constant 43 : index
    %188 = memref.load %arg2[%c43] : memref<48xf32, #tpu.memory_space<smem>>
    %189 = vector.broadcast %188 : f32 to vector<18x16xf32>
    %190 = arith.mulf %15, %189 : vector<18x16xf32>
    %191 = arith.addf %187, %190 : vector<18x16xf32>
    %c44 = arith.constant 44 : index
    %192 = memref.load %arg2[%c44] : memref<48xf32, #tpu.memory_space<smem>>
    %193 = vector.broadcast %192 : f32 to vector<18x16xf32>
    %194 = arith.mulf %16, %193 : vector<18x16xf32>
    %195 = arith.addf %191, %194 : vector<18x16xf32>
    %c45 = arith.constant 45 : index
    %196 = memref.load %arg2[%c45] : memref<48xf32, #tpu.memory_space<smem>>
    %197 = vector.broadcast %196 : f32 to vector<18x16xf32>
    %198 = arith.mulf %17, %197 : vector<18x16xf32>
    %199 = arith.addf %195, %198 : vector<18x16xf32>
    %c46 = arith.constant 46 : index
    %200 = memref.load %arg2[%c46] : memref<48xf32, #tpu.memory_space<smem>>
    %201 = vector.broadcast %200 : f32 to vector<18x16xf32>
    %202 = arith.mulf %18, %201 : vector<18x16xf32>
    %203 = arith.addf %199, %202 : vector<18x16xf32>
    %c47 = arith.constant 47 : index
    %204 = memref.load %arg2[%c47] : memref<48xf32, #tpu.memory_space<smem>>
    %205 = vector.broadcast %204 : f32 to vector<18x16xf32>
    %206 = arith.mulf %19, %205 : vector<18x16xf32>
    %207 = arith.addf %203, %206 : vector<18x16xf32>
    %208 = vector.extract_strided_slice %66 {offsets = [0, 0], sizes = [16, 16], strides = [1, 1]} : vector<18x16xf32> to vector<16x16xf32>
    %209 = vector.extract_strided_slice %66 {offsets = [1, 0], sizes = [16, 16], strides = [1, 1]} : vector<18x16xf32> to vector<16x16xf32>
    %210 = vector.extract_strided_slice %66 {offsets = [2, 0], sizes = [16, 16], strides = [1, 1]} : vector<18x16xf32> to vector<16x16xf32>
    %211 = vector.extract_strided_slice %113 {offsets = [0, 0], sizes = [16, 16], strides = [1, 1]} : vector<18x16xf32> to vector<16x16xf32>
    %212 = vector.extract_strided_slice %113 {offsets = [1, 0], sizes = [16, 16], strides = [1, 1]} : vector<18x16xf32> to vector<16x16xf32>
    %213 = vector.extract_strided_slice %113 {offsets = [2, 0], sizes = [16, 16], strides = [1, 1]} : vector<18x16xf32> to vector<16x16xf32>
    %214 = vector.extract_strided_slice %160 {offsets = [0, 0], sizes = [16, 16], strides = [1, 1]} : vector<18x16xf32> to vector<16x16xf32>
    %215 = vector.extract_strided_slice %160 {offsets = [1, 0], sizes = [16, 16], strides = [1, 1]} : vector<18x16xf32> to vector<16x16xf32>
    %216 = vector.extract_strided_slice %160 {offsets = [2, 0], sizes = [16, 16], strides = [1, 1]} : vector<18x16xf32> to vector<16x16xf32>
    %217 = vector.extract_strided_slice %207 {offsets = [0, 0], sizes = [16, 16], strides = [1, 1]} : vector<18x16xf32> to vector<16x16xf32>
    %218 = vector.extract_strided_slice %207 {offsets = [1, 0], sizes = [16, 16], strides = [1, 1]} : vector<18x16xf32> to vector<16x16xf32>
    %219 = vector.extract_strided_slice %207 {offsets = [2, 0], sizes = [16, 16], strides = [1, 1]} : vector<18x16xf32> to vector<16x16xf32>
    %c0_16 = arith.constant 0 : index
    %220 = memref.load %arg3[%c0_16] : memref<48xf32, #tpu.memory_space<smem>>
    %221 = vector.broadcast %220 : f32 to vector<16x16xf32>
    %222 = arith.mulf %208, %221 : vector<16x16xf32>
    %c1_17 = arith.constant 1 : index
    %223 = memref.load %arg3[%c1_17] : memref<48xf32, #tpu.memory_space<smem>>
    %224 = vector.broadcast %223 : f32 to vector<16x16xf32>
    %225 = arith.mulf %209, %224 : vector<16x16xf32>
    %226 = arith.addf %222, %225 : vector<16x16xf32>
    %c2_18 = arith.constant 2 : index
    %227 = memref.load %arg3[%c2_18] : memref<48xf32, #tpu.memory_space<smem>>
    %228 = vector.broadcast %227 : f32 to vector<16x16xf32>
    %229 = arith.mulf %210, %228 : vector<16x16xf32>
    %230 = arith.addf %226, %229 : vector<16x16xf32>
    %c3_19 = arith.constant 3 : index
    %231 = memref.load %arg3[%c3_19] : memref<48xf32, #tpu.memory_space<smem>>
    %232 = vector.broadcast %231 : f32 to vector<16x16xf32>
    %233 = arith.mulf %211, %232 : vector<16x16xf32>
    %234 = arith.addf %230, %233 : vector<16x16xf32>
    %c4_20 = arith.constant 4 : index
    %235 = memref.load %arg3[%c4_20] : memref<48xf32, #tpu.memory_space<smem>>
    %236 = vector.broadcast %235 : f32 to vector<16x16xf32>
    %237 = arith.mulf %212, %236 : vector<16x16xf32>
    %238 = arith.addf %234, %237 : vector<16x16xf32>
    %c5_21 = arith.constant 5 : index
    %239 = memref.load %arg3[%c5_21] : memref<48xf32, #tpu.memory_space<smem>>
    %240 = vector.broadcast %239 : f32 to vector<16x16xf32>
    %241 = arith.mulf %213, %240 : vector<16x16xf32>
    %242 = arith.addf %238, %241 : vector<16x16xf32>
    %c6_22 = arith.constant 6 : index
    %243 = memref.load %arg3[%c6_22] : memref<48xf32, #tpu.memory_space<smem>>
    %244 = vector.broadcast %243 : f32 to vector<16x16xf32>
    %245 = arith.mulf %214, %244 : vector<16x16xf32>
    %246 = arith.addf %242, %245 : vector<16x16xf32>
    %c7_23 = arith.constant 7 : index
    %247 = memref.load %arg3[%c7_23] : memref<48xf32, #tpu.memory_space<smem>>
    %248 = vector.broadcast %247 : f32 to vector<16x16xf32>
    %249 = arith.mulf %215, %248 : vector<16x16xf32>
    %250 = arith.addf %246, %249 : vector<16x16xf32>
    %c8_24 = arith.constant 8 : index
    %251 = memref.load %arg3[%c8_24] : memref<48xf32, #tpu.memory_space<smem>>
    %252 = vector.broadcast %251 : f32 to vector<16x16xf32>
    %253 = arith.mulf %216, %252 : vector<16x16xf32>
    %254 = arith.addf %250, %253 : vector<16x16xf32>
    %c9_25 = arith.constant 9 : index
    %255 = memref.load %arg3[%c9_25] : memref<48xf32, #tpu.memory_space<smem>>
    %256 = vector.broadcast %255 : f32 to vector<16x16xf32>
    %257 = arith.mulf %217, %256 : vector<16x16xf32>
    %258 = arith.addf %254, %257 : vector<16x16xf32>
    %c10_26 = arith.constant 10 : index
    %259 = memref.load %arg3[%c10_26] : memref<48xf32, #tpu.memory_space<smem>>
    %260 = vector.broadcast %259 : f32 to vector<16x16xf32>
    %261 = arith.mulf %218, %260 : vector<16x16xf32>
    %262 = arith.addf %258, %261 : vector<16x16xf32>
    %c11_27 = arith.constant 11 : index
    %263 = memref.load %arg3[%c11_27] : memref<48xf32, #tpu.memory_space<smem>>
    %264 = vector.broadcast %263 : f32 to vector<16x16xf32>
    %265 = arith.mulf %219, %264 : vector<16x16xf32>
    %266 = arith.addf %262, %265 : vector<16x16xf32>
    %c12_28 = arith.constant 12 : index
    %267 = memref.load %arg3[%c12_28] : memref<48xf32, #tpu.memory_space<smem>>
    %268 = vector.broadcast %267 : f32 to vector<16x16xf32>
    %269 = arith.mulf %208, %268 : vector<16x16xf32>
    %c13_29 = arith.constant 13 : index
    %270 = memref.load %arg3[%c13_29] : memref<48xf32, #tpu.memory_space<smem>>
    %271 = vector.broadcast %270 : f32 to vector<16x16xf32>
    %272 = arith.mulf %209, %271 : vector<16x16xf32>
    %273 = arith.addf %269, %272 : vector<16x16xf32>
    %c14_30 = arith.constant 14 : index
    %274 = memref.load %arg3[%c14_30] : memref<48xf32, #tpu.memory_space<smem>>
    %275 = vector.broadcast %274 : f32 to vector<16x16xf32>
    %276 = arith.mulf %210, %275 : vector<16x16xf32>
    %277 = arith.addf %273, %276 : vector<16x16xf32>
    %c15_31 = arith.constant 15 : index
    %278 = memref.load %arg3[%c15_31] : memref<48xf32, #tpu.memory_space<smem>>
    %279 = vector.broadcast %278 : f32 to vector<16x16xf32>
    %280 = arith.mulf %211, %279 : vector<16x16xf32>
    %281 = arith.addf %277, %280 : vector<16x16xf32>
    %c16_32 = arith.constant 16 : index
    %282 = memref.load %arg3[%c16_32] : memref<48xf32, #tpu.memory_space<smem>>
    %283 = vector.broadcast %282 : f32 to vector<16x16xf32>
    %284 = arith.mulf %212, %283 : vector<16x16xf32>
    %285 = arith.addf %281, %284 : vector<16x16xf32>
    %c17_33 = arith.constant 17 : index
    %286 = memref.load %arg3[%c17_33] : memref<48xf32, #tpu.memory_space<smem>>
    %287 = vector.broadcast %286 : f32 to vector<16x16xf32>
    %288 = arith.mulf %213, %287 : vector<16x16xf32>
    %289 = arith.addf %285, %288 : vector<16x16xf32>
    %c18_34 = arith.constant 18 : index
    %290 = memref.load %arg3[%c18_34] : memref<48xf32, #tpu.memory_space<smem>>
    %291 = vector.broadcast %290 : f32 to vector<16x16xf32>
    %292 = arith.mulf %214, %291 : vector<16x16xf32>
    %293 = arith.addf %289, %292 : vector<16x16xf32>
    %c19_35 = arith.constant 19 : index
    %294 = memref.load %arg3[%c19_35] : memref<48xf32, #tpu.memory_space<smem>>
    %295 = vector.broadcast %294 : f32 to vector<16x16xf32>
    %296 = arith.mulf %215, %295 : vector<16x16xf32>
    %297 = arith.addf %293, %296 : vector<16x16xf32>
    %c20_36 = arith.constant 20 : index
    %298 = memref.load %arg3[%c20_36] : memref<48xf32, #tpu.memory_space<smem>>
    %299 = vector.broadcast %298 : f32 to vector<16x16xf32>
    %300 = arith.mulf %216, %299 : vector<16x16xf32>
    %301 = arith.addf %297, %300 : vector<16x16xf32>
    %c21_37 = arith.constant 21 : index
    %302 = memref.load %arg3[%c21_37] : memref<48xf32, #tpu.memory_space<smem>>
    %303 = vector.broadcast %302 : f32 to vector<16x16xf32>
    %304 = arith.mulf %217, %303 : vector<16x16xf32>
    %305 = arith.addf %301, %304 : vector<16x16xf32>
    %c22_38 = arith.constant 22 : index
    %306 = memref.load %arg3[%c22_38] : memref<48xf32, #tpu.memory_space<smem>>
    %307 = vector.broadcast %306 : f32 to vector<16x16xf32>
    %308 = arith.mulf %218, %307 : vector<16x16xf32>
    %309 = arith.addf %305, %308 : vector<16x16xf32>
    %c23_39 = arith.constant 23 : index
    %310 = memref.load %arg3[%c23_39] : memref<48xf32, #tpu.memory_space<smem>>
    %311 = vector.broadcast %310 : f32 to vector<16x16xf32>
    %312 = arith.mulf %219, %311 : vector<16x16xf32>
    %313 = arith.addf %309, %312 : vector<16x16xf32>
    %c24_40 = arith.constant 24 : index
    %314 = memref.load %arg3[%c24_40] : memref<48xf32, #tpu.memory_space<smem>>
    %315 = vector.broadcast %314 : f32 to vector<16x16xf32>
    %316 = arith.mulf %208, %315 : vector<16x16xf32>
    %c25_41 = arith.constant 25 : index
    %317 = memref.load %arg3[%c25_41] : memref<48xf32, #tpu.memory_space<smem>>
    %318 = vector.broadcast %317 : f32 to vector<16x16xf32>
    %319 = arith.mulf %209, %318 : vector<16x16xf32>
    %320 = arith.addf %316, %319 : vector<16x16xf32>
    %c26_42 = arith.constant 26 : index
    %321 = memref.load %arg3[%c26_42] : memref<48xf32, #tpu.memory_space<smem>>
    %322 = vector.broadcast %321 : f32 to vector<16x16xf32>
    %323 = arith.mulf %210, %322 : vector<16x16xf32>
    %324 = arith.addf %320, %323 : vector<16x16xf32>
    %c27_43 = arith.constant 27 : index
    %325 = memref.load %arg3[%c27_43] : memref<48xf32, #tpu.memory_space<smem>>
    %326 = vector.broadcast %325 : f32 to vector<16x16xf32>
    %327 = arith.mulf %211, %326 : vector<16x16xf32>
    %328 = arith.addf %324, %327 : vector<16x16xf32>
    %c28_44 = arith.constant 28 : index
    %329 = memref.load %arg3[%c28_44] : memref<48xf32, #tpu.memory_space<smem>>
    %330 = vector.broadcast %329 : f32 to vector<16x16xf32>
    %331 = arith.mulf %212, %330 : vector<16x16xf32>
    %332 = arith.addf %328, %331 : vector<16x16xf32>
    %c29_45 = arith.constant 29 : index
    %333 = memref.load %arg3[%c29_45] : memref<48xf32, #tpu.memory_space<smem>>
    %334 = vector.broadcast %333 : f32 to vector<16x16xf32>
    %335 = arith.mulf %213, %334 : vector<16x16xf32>
    %336 = arith.addf %332, %335 : vector<16x16xf32>
    %c30_46 = arith.constant 30 : index
    %337 = memref.load %arg3[%c30_46] : memref<48xf32, #tpu.memory_space<smem>>
    %338 = vector.broadcast %337 : f32 to vector<16x16xf32>
    %339 = arith.mulf %214, %338 : vector<16x16xf32>
    %340 = arith.addf %336, %339 : vector<16x16xf32>
    %c31_47 = arith.constant 31 : index
    %341 = memref.load %arg3[%c31_47] : memref<48xf32, #tpu.memory_space<smem>>
    %342 = vector.broadcast %341 : f32 to vector<16x16xf32>
    %343 = arith.mulf %215, %342 : vector<16x16xf32>
    %344 = arith.addf %340, %343 : vector<16x16xf32>
    %c32_48 = arith.constant 32 : index
    %345 = memref.load %arg3[%c32_48] : memref<48xf32, #tpu.memory_space<smem>>
    %346 = vector.broadcast %345 : f32 to vector<16x16xf32>
    %347 = arith.mulf %216, %346 : vector<16x16xf32>
    %348 = arith.addf %344, %347 : vector<16x16xf32>
    %c33_49 = arith.constant 33 : index
    %349 = memref.load %arg3[%c33_49] : memref<48xf32, #tpu.memory_space<smem>>
    %350 = vector.broadcast %349 : f32 to vector<16x16xf32>
    %351 = arith.mulf %217, %350 : vector<16x16xf32>
    %352 = arith.addf %348, %351 : vector<16x16xf32>
    %c34_50 = arith.constant 34 : index
    %353 = memref.load %arg3[%c34_50] : memref<48xf32, #tpu.memory_space<smem>>
    %354 = vector.broadcast %353 : f32 to vector<16x16xf32>
    %355 = arith.mulf %218, %354 : vector<16x16xf32>
    %356 = arith.addf %352, %355 : vector<16x16xf32>
    %c35_51 = arith.constant 35 : index
    %357 = memref.load %arg3[%c35_51] : memref<48xf32, #tpu.memory_space<smem>>
    %358 = vector.broadcast %357 : f32 to vector<16x16xf32>
    %359 = arith.mulf %219, %358 : vector<16x16xf32>
    %360 = arith.addf %356, %359 : vector<16x16xf32>
    %c36_52 = arith.constant 36 : index
    %361 = memref.load %arg3[%c36_52] : memref<48xf32, #tpu.memory_space<smem>>
    %362 = vector.broadcast %361 : f32 to vector<16x16xf32>
    %363 = arith.mulf %208, %362 : vector<16x16xf32>
    %c37_53 = arith.constant 37 : index
    %364 = memref.load %arg3[%c37_53] : memref<48xf32, #tpu.memory_space<smem>>
    %365 = vector.broadcast %364 : f32 to vector<16x16xf32>
    %366 = arith.mulf %209, %365 : vector<16x16xf32>
    %367 = arith.addf %363, %366 : vector<16x16xf32>
    %c38_54 = arith.constant 38 : index
    %368 = memref.load %arg3[%c38_54] : memref<48xf32, #tpu.memory_space<smem>>
    %369 = vector.broadcast %368 : f32 to vector<16x16xf32>
    %370 = arith.mulf %210, %369 : vector<16x16xf32>
    %371 = arith.addf %367, %370 : vector<16x16xf32>
    %c39_55 = arith.constant 39 : index
    %372 = memref.load %arg3[%c39_55] : memref<48xf32, #tpu.memory_space<smem>>
    %373 = vector.broadcast %372 : f32 to vector<16x16xf32>
    %374 = arith.mulf %211, %373 : vector<16x16xf32>
    %375 = arith.addf %371, %374 : vector<16x16xf32>
    %c40_56 = arith.constant 40 : index
    %376 = memref.load %arg3[%c40_56] : memref<48xf32, #tpu.memory_space<smem>>
    %377 = vector.broadcast %376 : f32 to vector<16x16xf32>
    %378 = arith.mulf %212, %377 : vector<16x16xf32>
    %379 = arith.addf %375, %378 : vector<16x16xf32>
    %c41_57 = arith.constant 41 : index
    %380 = memref.load %arg3[%c41_57] : memref<48xf32, #tpu.memory_space<smem>>
    %381 = vector.broadcast %380 : f32 to vector<16x16xf32>
    %382 = arith.mulf %213, %381 : vector<16x16xf32>
    %383 = arith.addf %379, %382 : vector<16x16xf32>
    %c42_58 = arith.constant 42 : index
    %384 = memref.load %arg3[%c42_58] : memref<48xf32, #tpu.memory_space<smem>>
    %385 = vector.broadcast %384 : f32 to vector<16x16xf32>
    %386 = arith.mulf %214, %385 : vector<16x16xf32>
    %387 = arith.addf %383, %386 : vector<16x16xf32>
    %c43_59 = arith.constant 43 : index
    %388 = memref.load %arg3[%c43_59] : memref<48xf32, #tpu.memory_space<smem>>
    %389 = vector.broadcast %388 : f32 to vector<16x16xf32>
    %390 = arith.mulf %215, %389 : vector<16x16xf32>
    %391 = arith.addf %387, %390 : vector<16x16xf32>
    %c44_60 = arith.constant 44 : index
    %392 = memref.load %arg3[%c44_60] : memref<48xf32, #tpu.memory_space<smem>>
    %393 = vector.broadcast %392 : f32 to vector<16x16xf32>
    %394 = arith.mulf %216, %393 : vector<16x16xf32>
    %395 = arith.addf %391, %394 : vector<16x16xf32>
    %c45_61 = arith.constant 45 : index
    %396 = memref.load %arg3[%c45_61] : memref<48xf32, #tpu.memory_space<smem>>
    %397 = vector.broadcast %396 : f32 to vector<16x16xf32>
    %398 = arith.mulf %217, %397 : vector<16x16xf32>
    %399 = arith.addf %395, %398 : vector<16x16xf32>
    %c46_62 = arith.constant 46 : index
    %400 = memref.load %arg3[%c46_62] : memref<48xf32, #tpu.memory_space<smem>>
    %401 = vector.broadcast %400 : f32 to vector<16x16xf32>
    %402 = arith.mulf %218, %401 : vector<16x16xf32>
    %403 = arith.addf %399, %402 : vector<16x16xf32>
    %c47_63 = arith.constant 47 : index
    %404 = memref.load %arg3[%c47_63] : memref<48xf32, #tpu.memory_space<smem>>
    %405 = vector.broadcast %404 : f32 to vector<16x16xf32>
    %406 = arith.mulf %219, %405 : vector<16x16xf32>
    %407 = arith.addf %403, %406 : vector<16x16xf32>
    %408 = vector.shape_cast %266 : vector<16x16xf32> to vector<1x16x16xf32>
    %409 = vector.shape_cast %313 : vector<16x16xf32> to vector<1x16x16xf32>
    %410 = vector.shape_cast %360 : vector<16x16xf32> to vector<1x16x16xf32>
    %411 = vector.shape_cast %407 : vector<16x16xf32> to vector<1x16x16xf32>
    %412 = tpu.concatenate %408, %409, %410, %411 in 0 : vector<1x16x16xf32>, vector<1x16x16xf32>, vector<1x16x16xf32>, vector<1x16x16xf32> -> vector<4x16x16xf32>
    %c0_64 = arith.constant 0 : index
    %c0_65 = arith.constant 0 : index
    %c0_66 = arith.constant 0 : index
    %c0_67 = arith.constant 0 : index
    %413 = vector.load %arg4[%c0_64, %c0_65, %c0_66, %c0_67] : memref<1x4x16x16xf32, #tpu.memory_space<vmem>>, vector<1x4x16x16xf32>
    %414 = vector.shape_cast %413 : vector<1x4x16x16xf32> to vector<4x16x16xf32>
    %415 = vector.shape_cast %412 : vector<4x16x16xf32> to vector<1x4x16x16xf32>
    tpu.vector_store %arg4[%c0_64, %c0_65, %c0_66, %c0_67], %415 {strides = array<i32>} : memref<1x4x16x16xf32, #tpu.memory_space<vmem>>, vector<1x4x16x16xf32>,
    %cst = arith.constant dense<0.000000e+00> : vector<4x16xf32>
    %416 = vector.multi_reduction <add>, %412, %cst [2] : vector<4x16x16xf32> to vector<4x16xf32>
    %cst_68 = arith.constant dense<0.000000e+00> : vector<4xf32>
    %417 = vector.multi_reduction <add>, %416, %cst_68 [1] : vector<4x16xf32> to vector<4xf32>
    %418 = vector.shape_cast %417 : vector<4xf32> to vector<4x1xf32>
    %419 = arith.mulf %412, %412 : vector<4x16x16xf32>
    %cst_69 = arith.constant dense<0.000000e+00> : vector<4x16xf32>
    %420 = vector.multi_reduction <add>, %419, %cst_69 [2] : vector<4x16x16xf32> to vector<4x16xf32>
    %cst_70 = arith.constant dense<0.000000e+00> : vector<4xf32>
    %421 = vector.multi_reduction <add>, %420, %cst_70 [1] : vector<4x16xf32> to vector<4xf32>
    %422 = vector.shape_cast %421 : vector<4xf32> to vector<4x1xf32>
    %423 = tpu.concatenate %418, %422 in 1 : vector<4x1xf32>, vector<4x1xf32> -> vector<4x2xf32>
    %c0_71 = arith.constant 0 : index
    %c0_72 = arith.constant 0 : index
    %c0_73 = arith.constant 0 : index
    %424 = vector.load %arg5[%c0_71, %c0_72, %c0_73] : memref<1x4x2xf32, #tpu.memory_space<vmem>>, vector<1x4x2xf32>
    %425 = vector.shape_cast %424 : vector<1x4x2xf32> to vector<4x2xf32>
    %426 = vector.shape_cast %423 : vector<4x2xf32> to vector<1x4x2xf32>
    tpu.vector_store %arg5[%c0_71, %c0_72, %c0_73], %426 {strides = array<i32>} : memref<1x4x2xf32, #tpu.memory_space<vmem>>, vector<1x4x2xf32>,
    return
  }
  func.func @transform_0(%arg0: i32) -> (i32, i32, i32, i32) {
    %c0_i32 = arith.constant 0 : i32
    %c0_i32_0 = arith.constant 0 : i32
    %c0_i32_1 = arith.constant 0 : i32
    %c0_i32_2 = arith.constant 0 : i32
    return %arg0, %c0_i32, %c0_i32_0, %c0_i32_1 : i32, i32, i32, i32
  }
  func.func @transform_1(%arg0: i32) -> i32 {
    %c0_i32 = arith.constant 0 : i32
    %c0_i32_0 = arith.constant 0 : i32
    return %c0_i32 : i32
  }
  func.func @transform_2(%arg0: i32) -> i32 {
    %c0_i32 = arith.constant 0 : i32
    %c0_i32_0 = arith.constant 0 : i32
    return %c0_i32 : i32
  }
  func.func @transform_3(%arg0: i32) -> (i32, i32, i32, i32) {
    %c0_i32 = arith.constant 0 : i32
    %c0_i32_0 = arith.constant 0 : i32
    %c0_i32_1 = arith.constant 0 : i32
    %c0_i32_2 = arith.constant 0 : i32
    return %arg0, %c0_i32, %c0_i32_0, %c0_i32_1 : i32, i32, i32, i32
  }
  func.func @transform_4(%arg0: i32) -> (i32, i32, i32) {
    %c0_i32 = arith.constant 0 : i32
    %c0_i32_0 = arith.constant 0 : i32
    %c0_i32_1 = arith.constant 0 : i32
    return %arg0, %c0_i32, %c0_i32_0 : i32, i32, i32
  }
}

module attributes {stable_mosaic.version = 11 : i64} {
  func.func @_bn_relu_kernel(%arg0: i32, %arg1: memref<8x256xf32, #tpu.memory_space<vmem>>, %arg2: memref<8x1xf32, #tpu.memory_space<vmem>>, %arg3: memref<8x1xf32, #tpu.memory_space<vmem>>, %arg4: memref<8x256xf32, #tpu.memory_space<vmem>>) attributes {dimension_semantics = [#tpu.dimension_semantics<arbitrary>], iteration_bounds = array<i64: 1>, scalar_prefetch = 0 : i64, scratch_operands = 0 : i64, tpu.core_type = #tpu.core_type<tc>, window_params = [{pipeline_mode = #tpu.pipeline_mode<synchronous>, transform_indices = @transform_0, window_bounds = array<i64: 8, 256>}, {pipeline_mode = #tpu.pipeline_mode<synchronous>, transform_indices = @transform_1, window_bounds = array<i64: 8, 1>}, {pipeline_mode = #tpu.pipeline_mode<synchronous>, transform_indices = @transform_2, window_bounds = array<i64: 8, 1>}, {pipeline_mode = #tpu.pipeline_mode<synchronous>, transform_indices = @transform_3, window_bounds = array<i64: 8, 256>}]} {
    %c0 = arith.constant 0 : index
    %c0_0 = arith.constant 0 : index
    %0 = vector.load %arg1[%c0, %c0_0] : memref<8x256xf32, #tpu.memory_space<vmem>>, vector<8x256xf32>
    %c0_1 = arith.constant 0 : index
    %c0_2 = arith.constant 0 : index
    %1 = vector.load %arg2[%c0_1, %c0_2] : memref<8x1xf32, #tpu.memory_space<vmem>>, vector<8x1xf32>
    %2 = vector.broadcast %1 : vector<8x1xf32> to vector<8x256xf32>
    %3 = arith.mulf %0, %2 : vector<8x256xf32>
    %c0_3 = arith.constant 0 : index
    %c0_4 = arith.constant 0 : index
    %4 = vector.load %arg3[%c0_3, %c0_4] : memref<8x1xf32, #tpu.memory_space<vmem>>, vector<8x1xf32>
    %5 = vector.broadcast %4 : vector<8x1xf32> to vector<8x256xf32>
    %6 = arith.addf %3, %5 : vector<8x256xf32>
    %cst = arith.constant 0.000000e+00 : f32
    %7 = vector.broadcast %cst : f32 to vector<8x256xf32>
    %8 = arith.maximumf %6, %7 : vector<8x256xf32>
    %c0_5 = arith.constant 0 : index
    %c0_6 = arith.constant 0 : index
    %9 = vector.load %arg4[%c0_5, %c0_6] : memref<8x256xf32, #tpu.memory_space<vmem>>, vector<8x256xf32>
    tpu.vector_store %arg4[%c0_5, %c0_6], %8 {strides = array<i32>} : memref<8x256xf32, #tpu.memory_space<vmem>>, vector<8x256xf32>,
    return
  }
  func.func @transform_0(%arg0: i32) -> (i32, i32) {
    %c0_i32 = arith.constant 0 : i32
    %c0_i32_0 = arith.constant 0 : i32
    %c0_i32_1 = arith.constant 0 : i32
    return %c0_i32, %c0_i32_0 : i32, i32
  }
  func.func @transform_1(%arg0: i32) -> (i32, i32) {
    %c0_i32 = arith.constant 0 : i32
    %c0_i32_0 = arith.constant 0 : i32
    %c0_i32_1 = arith.constant 0 : i32
    return %c0_i32, %c0_i32_0 : i32, i32
  }
  func.func @transform_2(%arg0: i32) -> (i32, i32) {
    %c0_i32 = arith.constant 0 : i32
    %c0_i32_0 = arith.constant 0 : i32
    %c0_i32_1 = arith.constant 0 : i32
    return %c0_i32, %c0_i32_0 : i32, i32
  }
  func.func @transform_3(%arg0: i32) -> (i32, i32) {
    %c0_i32 = arith.constant 0 : i32
    %c0_i32_0 = arith.constant 0 : i32
    %c0_i32_1 = arith.constant 0 : i32
    return %c0_i32, %c0_i32_0 : i32, i32
  }
}

</mosaic_0001>

<llo_original>
// kernel: squeeze.4
$region0: #{squeeze.4}
  %s0 = inlined_call_operand.vmem [shape: f32[4,4,1,3], index: 0, kind: input, shape index: {}]
  %s1 = inlined_call_operand.vmem [shape: f32[48], index: 1, kind: output, shape index: {}]
  $region1: #{squeeze.4} parent=0
    #allocation0 [shape = 'u8[4096]{0}', space=vmem, size = 0x1000, scoped, tag = 'scoped mem for output reshape']
    #allocation1 [shape = 'u8[16384]{0}', space=vmem, size = 0x4000, scoped, tag = 'scoped mem for input reshape']
    %s3 = ssub.s32 16, 1
    %s4 = scalar_lea.vmem %s0, 12
    %v5 = vld [vmem:[%s4] sm:%s3]
    %s6 = scalar_lea.vmem [#allocation1], 24
    %7 = vst [vmem:[%s6] sm:%s3] %v5
    %s8 = scalar_lea.vmem %s0, 8
    %v9 = vld [vmem:[%s8] sm:%s3]
    %s10 = scalar_lea.vmem [#allocation1], 16
    %11 = vst [vmem:[%s10] sm:%s3] %v9
    %s12 = scalar_lea.vmem %s0, 4
    %v13 = vld [vmem:[%s12] sm:%s3]
    %s14 = scalar_lea.vmem [#allocation1], 8
    %15 = vst [vmem:[%s14] sm:%s3] %v13
    %v16 = vld [vmem:[%s0] sm:%s3]
    %17 = vst [vmem:[#allocation1] sm:%s3] %v16
    %v18 = vld [vmem:[#allocation1] sm:$0x1]
    %vm19 = vcmask 23552
    %20 = vst.msk [vmem:[#allocation0] sm:$0x1] %vm19, %v18
    %s21 = scalar_lea.vmem [#allocation1], 27
    %v22 = vld [vmem:[%s21] sm:$0x1]
    %23 = vrot.lane.b32.xlu0 %v22, 45
    %v24 = vpop.permute.xlu0 %23
    %vm25 = vcmask 392552
    %26 = vst.msk [vmem:[#allocation0] sm:$0x1] %vm25, %v24
    %s27 = scalar_lea.vmem [#allocation1], 26
    %v28 = vld [vmem:[%s27] sm:$0x1]
    %29 = vrot.lane.b32.xlu0 %v28, 42
    %v30 = vpop.permute.xlu0 %29
    %vm31 = vcmask 367952
    %32 = vst.msk [vmem:[#allocation0] sm:$0x1] %vm31, %v30
    %s33 = scalar_lea.vmem [#allocation1], 25
    %v34 = vld [vmem:[%s33] sm:$0x1]
    %35 = vrot.lane.b32.xlu0 %v34, 39
    %v36 = vpop.permute.xlu0 %35
    %vm37 = vcmask 343352
    %38 = vst.msk [vmem:[#allocation0] sm:$0x1] %vm37, %v36
    %s39 = scalar_lea.vmem [#allocation1], 24
    %v40 = vld [vmem:[%s39] sm:$0x1]
    %41 = vrot.lane.b32.xlu0 %v40, 36
    %v42 = vpop.permute.xlu0 %41
    %vm43 = vcmask 318752
    %44 = vst.msk [vmem:[#allocation0] sm:$0x1] %vm43, %v42
    %s45 = scalar_lea.vmem [#allocation1], 19
    %v46 = vld [vmem:[%s45] sm:$0x1]
    %47 = vrot.lane.b32.xlu0 %v46, 33
    %v48 = vpop.permute.xlu0 %47
    %vm49 = vcmask 294152
    %50 = vst.msk [vmem:[#allocation0] sm:$0x1] %vm49, %v48
    %s51 = scalar_lea.vmem [#allocation1], 18
    %v52 = vld [vmem:[%s51] sm:$0x1]
    %53 = vrot.lane.b32.xlu0 %v52, 30
    %v54 = vpop.permute.xlu0 %53
    %vm55 = vcmask 269552
    %56 = vst.msk [vmem:[#allocation0] sm:$0x1] %vm55, %v54
    %s57 = scalar_lea.vmem [#allocation1], 17
    %v58 = vld [vmem:[%s57] sm:$0x1]
    %59 = vrot.lane.b32.xlu0 %v58, 27
    %v60 = vpop.permute.xlu0 %59
    %vm61 = vcmask 244952
    %62 = vst.msk [vmem:[#allocation0] sm:$0x1] %vm61, %v60
    %s63 = scalar_lea.vmem [#allocation1], 16
    %v64 = vld [vmem:[%s63] sm:$0x1]
    %65 = vrot.lane.b32.xlu0 %v64, 24
    %v66 = vpop.permute.xlu0 %65
    %vm67 = vcmask 220352
    %68 = vst.msk [vmem:[#allocation0] sm:$0x1] %vm67, %v66
    %s69 = scalar_lea.vmem [#allocation1], 11
    %v70 = vld [vmem:[%s69] sm:$0x1]
    %71 = vrot.lane.b32.xlu0 %v70, 21
    %v72 = vpop.permute.xlu0 %71
    %vm73 = vcmask 195752
    %74 = vst.msk [vmem:[#allocation0] sm:$0x1] %vm73, %v72
    %s75 = scalar_lea.vmem [#allocation1], 10
    %v76 = vld [vmem:[%s75] sm:$0x1]
    %77 = vrot.lane.b32.xlu0 %v76, 18
    %v78 = vpop.permute.xlu0 %77
    %vm79 = vcmask 171152
    %80 = vst.msk [vmem:[#allocation0] sm:$0x1] %vm79, %v78
    %s81 = scalar_lea.vmem [#allocation1], 9
    %v82 = vld [vmem:[%s81] sm:$0x1]
    %83 = vrot.lane.b32.xlu0 %v82, 15
    %v84 = vpop.permute.xlu0 %83
    %vm85 = vcmask 146552
    %86 = vst.msk [vmem:[#allocation0] sm:$0x1] %vm85, %v84
    %s87 = scalar_lea.vmem [#allocation1], 8
    %v88 = vld [vmem:[%s87] sm:$0x1]
    %89 = vrot.lane.b32.xlu0 %v88, 12
    %v90 = vpop.permute.xlu0 %89
    %vm91 = vcmask 121952
    %92 = vst.msk [vmem:[#allocation0] sm:$0x1] %vm91, %v90
    %s93 = scalar_lea.vmem [#allocation1], 3
    %v94 = vld [vmem:[%s93] sm:$0x1]
    %95 = vrot.lane.b32.xlu0 %v94, 9
    %v96 = vpop.permute.xlu0 %95
    %vm97 = vcmask 97352
    %98 = vst.msk [vmem:[#allocation0] sm:$0x1] %vm97, %v96
    %s99 = scalar_lea.vmem [#allocation1], 2
    %v100 = vld [vmem:[%s99] sm:$0x1]
    %101 = vrot.lane.b32.xlu0 %v100, 6
    %v102 = vpop.permute.xlu0 %101
    %vm103 = vcmask 72752
    %104 = vst.msk [vmem:[#allocation0] sm:$0x1] %vm103, %v102
    %s105 = scalar_lea.vmem [#allocation1], 1
    %v106 = vld [vmem:[%s105] sm:$0x1]
    %107 = vrot.lane.b32.xlu0 %v106, 3
    %v108 = vpop.permute.xlu0 %107
    %vm109 = vcmask 48152
    %110 = vst.msk [vmem:[#allocation0] sm:$0x1] %vm109, %v108
    %s112 = ssub.s32 2, 1
    %v113 = vld [vmem:[#allocation0] sm:%s112]
    %s115 = ssub.s32 2, 1
    %116 = vst [vmem:[%s1] sm:%s115] %v113

// kernel: squeeze.5
$region0: #{squeeze.5}
  %s0 = inlined_call_operand.vmem [shape: f32[4,4,3,1], index: 0, kind: input, shape index: {}]
  %s1 = inlined_call_operand.vmem [shape: f32[48], index: 1, kind: output, shape index: {}]
  $region1: #{squeeze.5} parent=0
    #allocation0 [shape = 'u8[4096]{0}', space=vmem, size = 0x1000, scoped, tag = 'scoped mem for output reshape']
    #allocation1 [shape = 'u8[16384]{0}', space=vmem, size = 0x4000, scoped, tag = 'scoped mem for input reshape']
    %s3 = ssub.s32 16, 1
    %s4 = scalar_lea.vmem %s0, 12
    %v5 = vld [vmem:[%s4] sm:%s3]
    %s6 = scalar_lea.vmem [#allocation1], 24
    %7 = vst [vmem:[%s6] sm:%s3] %v5
    %s8 = scalar_lea.vmem %s0, 8
    %v9 = vld [vmem:[%s8] sm:%s3]
    %s10 = scalar_lea.vmem [#allocation1], 16
    %11 = vst [vmem:[%s10] sm:%s3] %v9
    %s12 = scalar_lea.vmem %s0, 4
    %v13 = vld [vmem:[%s12] sm:%s3]
    %s14 = scalar_lea.vmem [#allocation1], 8
    %15 = vst [vmem:[%s14] sm:%s3] %v13
    %v16 = vld [vmem:[%s0] sm:%s3]
    %17 = vst [vmem:[#allocation1] sm:%s3] %v16
    %v18 = vld [vmem:[#allocation1] sm:$0x1]
    %vm19 = vcmask 23552
    %20 = vst.msk [vmem:[#allocation0] sm:$0x1] %vm19, %v18
    %s21 = scalar_lea.vmem [#allocation1], 27
    %v22 = vld [vmem:[%s21] sm:$0x1]
    %23 = vrot.lane.b32.xlu0 %v22, 45
    %v24 = vpop.permute.xlu0 %23
    %vm25 = vcmask 392552
    %26 = vst.msk [vmem:[#allocation0] sm:$0x1] %vm25, %v24
    %s27 = scalar_lea.vmem [#allocation1], 26
    %v28 = vld [vmem:[%s27] sm:$0x1]
    %29 = vrot.lane.b32.xlu0 %v28, 42
    %v30 = vpop.permute.xlu0 %29
    %vm31 = vcmask 367952
    %32 = vst.msk [vmem:[#allocation0] sm:$0x1] %vm31, %v30
    %s33 = scalar_lea.vmem [#allocation1], 25
    %v34 = vld [vmem:[%s33] sm:$0x1]
    %35 = vrot.lane.b32.xlu0 %v34, 39
    %v36 = vpop.permute.xlu0 %35
    %vm37 = vcmask 343352
    %38 = vst.msk [vmem:[#allocation0] sm:$0x1] %vm37, %v36
    %s39 = scalar_lea.vmem [#allocation1], 24
    %v40 = vld [vmem:[%s39] sm:$0x1]
    %41 = vrot.lane.b32.xlu0 %v40, 36
    %v42 = vpop.permute.xlu0 %41
    %vm43 = vcmask 318752
    %44 = vst.msk [vmem:[#allocation0] sm:$0x1] %vm43, %v42
    %s45 = scalar_lea.vmem [#allocation1], 19
    %v46 = vld [vmem:[%s45] sm:$0x1]
    %47 = vrot.lane.b32.xlu0 %v46, 33
    %v48 = vpop.permute.xlu0 %47
    %vm49 = vcmask 294152
    %50 = vst.msk [vmem:[#allocation0] sm:$0x1] %vm49, %v48
    %s51 = scalar_lea.vmem [#allocation1], 18
    %v52 = vld [vmem:[%s51] sm:$0x1]
    %53 = vrot.lane.b32.xlu0 %v52, 30
    %v54 = vpop.permute.xlu0 %53
    %vm55 = vcmask 269552
    %56 = vst.msk [vmem:[#allocation0] sm:$0x1] %vm55, %v54
    %s57 = scalar_lea.vmem [#allocation1], 17
    %v58 = vld [vmem:[%s57] sm:$0x1]
    %59 = vrot.lane.b32.xlu0 %v58, 27
    %v60 = vpop.permute.xlu0 %59
    %vm61 = vcmask 244952
    %62 = vst.msk [vmem:[#allocation0] sm:$0x1] %vm61, %v60
    %s63 = scalar_lea.vmem [#allocation1], 16
    %v64 = vld [vmem:[%s63] sm:$0x1]
    %65 = vrot.lane.b32.xlu0 %v64, 24
    %v66 = vpop.permute.xlu0 %65
    %vm67 = vcmask 220352
    %68 = vst.msk [vmem:[#allocation0] sm:$0x1] %vm67, %v66
    %s69 = scalar_lea.vmem [#allocation1], 11
    %v70 = vld [vmem:[%s69] sm:$0x1]
    %71 = vrot.lane.b32.xlu0 %v70, 21
    %v72 = vpop.permute.xlu0 %71
    %vm73 = vcmask 195752
    %74 = vst.msk [vmem:[#allocation0] sm:$0x1] %vm73, %v72
    %s75 = scalar_lea.vmem [#allocation1], 10
    %v76 = vld [vmem:[%s75] sm:$0x1]
    %77 = vrot.lane.b32.xlu0 %v76, 18
    %v78 = vpop.permute.xlu0 %77
    %vm79 = vcmask 171152
    %80 = vst.msk [vmem:[#allocation0] sm:$0x1] %vm79, %v78
    %s81 = scalar_lea.vmem [#allocation1], 9
    %v82 = vld [vmem:[%s81] sm:$0x1]
    %83 = vrot.lane.b32.xlu0 %v82, 15
    %v84 = vpop.permute.xlu0 %83
    %vm85 = vcmask 146552
    %86 = vst.msk [vmem:[#allocation0] sm:$0x1] %vm85, %v84
    %s87 = scalar_lea.vmem [#allocation1], 8
    %v88 = vld [vmem:[%s87] sm:$0x1]
    %89 = vrot.lane.b32.xlu0 %v88, 12
    %v90 = vpop.permute.xlu0 %89
    %vm91 = vcmask 121952
    %92 = vst.msk [vmem:[#allocation0] sm:$0x1] %vm91, %v90
    %s93 = scalar_lea.vmem [#allocation1], 3
    %v94 = vld [vmem:[%s93] sm:$0x1]
    %95 = vrot.lane.b32.xlu0 %v94, 9
    %v96 = vpop.permute.xlu0 %95
    %vm97 = vcmask 97352
    %98 = vst.msk [vmem:[#allocation0] sm:$0x1] %vm97, %v96
    %s99 = scalar_lea.vmem [#allocation1], 2
    %v100 = vld [vmem:[%s99] sm:$0x1]
    %101 = vrot.lane.b32.xlu0 %v100, 6
    %v102 = vpop.permute.xlu0 %101
    %vm103 = vcmask 72752
    %104 = vst.msk [vmem:[#allocation0] sm:$0x1] %vm103, %v102
    %s105 = scalar_lea.vmem [#allocation1], 1
    %v106 = vld [vmem:[%s105] sm:$0x1]
    %107 = vrot.lane.b32.xlu0 %v106, 3
    %v108 = vpop.permute.xlu0 %107
    %vm109 = vcmask 48152
    %110 = vst.msk [vmem:[#allocation0] sm:$0x1] %vm109, %v108
    %s112 = ssub.s32 2, 1
    %v113 = vld [vmem:[#allocation0] sm:%s112]
    %s115 = ssub.s32 2, 1
    %116 = vst [vmem:[%s1] sm:%s115] %v113

// kernel: double_conv_striped.3
$region0: #{double_conv_striped.3}
  #allocation0 [shape = 'u32[]', space=smem, size = 0x4, offset = 0x4, fixed_abs, tag = 'smem constant byte address 0x4 - core index']
  #allocation1 [shape = 'u32[72,128]{1,0:T(1,128)}', space=vmem, size = 0x9000, scoped, tag = 'internal scratch']
  %s0 = inlined_call_operand.vmem [shape: f32[8,256], index: 0, kind: input, shape index: {}]
  %s1 = inlined_call_operand.vmem [shape: f32[8,1], index: 1, kind: input, shape index: {}]
  %s2 = inlined_call_operand.vmem [shape: f32[8,1], index: 2, kind: input, shape index: {}]
  %s3 = inlined_call_operand.vmem [shape: f32[8,256], index: 3, kind: output, shape index: {}]
  %s4 = sld [smem:[#allocation0]]
  $region22: #{double_conv_striped.3} parent=0
    _
  %s6 = ssub.s32 1, %s4
  %s7 = scalar_select 0, %s6, %s4
  // Predicated region
  $region2: #{double_conv_striped.3} parent=0 // pred_check
    _
  $region3: #{double_conv_striped.3} parent=0 // pred_check_branch
    %9 = sbr.rel (0) target = $region5
  $region4: #{double_conv_striped.3} parent=0 // pred_region
    _
  $region5: #{double_conv_striped.3} parent=0 // pred_fallthru
    _
  // Predicated region
  $region6: #{double_conv_striped.3} parent=0 // pred_check
    _
  $region7: #{double_conv_striped.3} parent=0 // pred_check_branch
    %11 = sbr.rel (0) target = $region9
  $region8: #{double_conv_striped.3} parent=0 // pred_region
    _
  $region9: #{double_conv_striped.3} parent=0 // pred_fallthru
    _
  // Predicated region
  $region10: #{double_conv_striped.3} parent=0 // pred_check
    _
  $region11: #{double_conv_striped.3} parent=0 // pred_check_branch
    %13 = sbr.rel (0) target = $region13
  $region12: #{double_conv_striped.3} parent=0 // pred_region
    _
  $region13: #{double_conv_striped.3} parent=0 // pred_fallthru
    _
  %v14 = vld [vmem:[%s0] sm:$0xff]
  %v15 = vld [vmem:[%s0 + $0x8] sm:$0xff]
  %v16 = vld [vmem:[%s1] sm:$0xff]
  %18 = vset.pattern.permute.xlu0 0
  %19 = vperm.xlu0 %18, %v16
  %v20 = vpop.permute.xlu0 %19
  %v22 = vmul.f32 %v14, %v20
  %v23 = vmul.f32 %v15, %v20
  %v24 = vld [vmem:[%s2] sm:$0xff]
  %26 = vset.pattern.permute.xlu0 0
  %27 = vperm.xlu0 %26, %v24
  %v28 = vpop.permute.xlu0 %27
  %v30 = vadd.f32 %v22, %v28
  %v31 = vadd.f32 %v23, %v28
  %v32 = vmax.f32 %v30, 0.0
  %v33 = vmax.f32 %v31, 0.0
  %34 = vst [vmem:[%s3] sm:$0xff] %v32
  %35 = vst [vmem:[%s3 + $0x8] sm:$0xff] %v33
  // Predicated region
  $region14: #{double_conv_striped.3} parent=0 // pred_check
    _
  $region15: #{double_conv_striped.3} parent=0 // pred_check_branch
    %37 = sbr.rel (0) target = $region17
  $region16: #{double_conv_striped.3} parent=0 // pred_region
    _
  $region17: #{double_conv_striped.3} parent=0 // pred_fallthru
    _
  // Predicated region
  $region18: #{double_conv_striped.3} parent=0 // pred_check
    _
  $region19: #{double_conv_striped.3} parent=0 // pred_check_branch
    %39 = sbr.rel (0) target = $region21
  $region20: #{double_conv_striped.3} parent=0 // pred_region
    _
  $region21: #{double_conv_striped.3} parent=0 // pred_fallthru
    _

// kernel: double_conv_striped.2
$region0: #{double_conv_striped.2}
  #allocation0 [shape = 'u32[]', space=smem, size = 0x4, offset = 0x4, fixed_abs, tag = 'smem constant byte address 0x4 - core index']
  #allocation1 [shape = 'u32[72,128]{1,0:T(1,128)}', space=vmem, size = 0x9000, scoped, tag = 'internal scratch']
  %s0 = inlined_call_operand.vmem [shape: f32[2,4,18,18], index: 0, kind: input, shape index: {}]
  %s1 = inlined_call_operand.vmem [shape: f32[48], index: 1, kind: input, shape index: {}]
  %s2 = inlined_call_operand.vmem [shape: f32[48], index: 2, kind: input, shape index: {}]
  %s3 = inlined_call_operand.vmem [shape: f32[2,4,16,16], index: 3, kind: output, shape index: {0}]
  %s4 = inlined_call_operand.vmem [shape: f32[2,4,2], index: 4, kind: output, shape index: {1}]
  %5 = xla_tuple %s3, %s4
  %s6 = sld [smem:[#allocation0]]
  $region61: #{double_conv_striped.2} parent=0
    _
  %s8 = ssub.s32 1, %s6
  %s9 = scalar_select 0, %s8, %s6
  $region1: #{double_conv_striped.2} parent=0
    #allocation2 [shape = 'u8[512]{0}', space=smem, size = 0x200, scoped, tag = 'input window, operand 1, single buffered']
    #allocation3 [shape = 's32[2]{0}', space=sflag, size = 0x8, scoped, tag = 'scoped memory for double_conv_striped.2']
    #allocation4 [shape = 'u8[512]{0}', space=smem, size = 0x200, scoped, tag = 'input window, operand 2, single buffered']
    #allocation5 [shape = 's32[1]{0}', space=sflag, size = 0x4, scoped, tag = 'scoped memory for double_conv_striped.2']
    %10 = vsyncpa [#allocation3], 0
    %11 = vsyncpa [#allocation5], 0
    loop: start=0, step=1, limit=4
    $region2: #{double_conv_striped.2} parent=1 // loop_pre_header
      _
    $region3: #{double_conv_striped.2} parent=1 // loop_header
      %s13 = sphi 0, %s17
      %p14 = scmp.ge.s32.totalorder %s13, 4
      %s23 = sphi 0, %s25
      %s26 = sphi 0, %s23
      %s27 = sphi 0, %s26
      %s43 = sphi 0, %s27
      %s47 = sphi 0, %s47
      %s49 = sphi 0, %s47
      %s50 = sphi 0, %s49
      %s64 = sphi 0, %s50
      %s68 = sphi 0, %s68
      %s70 = sphi 0, %s68
      %s71 = sphi 0, %s70
      %s85 = sphi 0, %s71
      %s91 = sphi 0, %s93
      %s94 = sphi 0, %s91
      %s95 = sphi 0, %s94
      %s111 = sphi 0, %s95
      %s117 = sphi 0, %s119
      %s120 = sphi 0, %s117
      %s121 = sphi 0, %s120
      %s137 = sphi 0, %s121
    $region4: #{double_conv_striped.2} parent=1 // loop_header_branch
      %16 = sbr.rel (%p14) target = $region8
    $region5: #{double_conv_striped.2} parent=1 // loop_body
      %s18 = ssub.s32 %s13, 1
      %s19 = ssub.s32 %s13, 2
      %s20 = sadd.s32 %s13, 1
      %s21 = ssub.s32 %s13, %s20
      %p22 = scmp.eq.s32.totalorder %s21, 0
      %s24 = sadd.s32 %s23, 1
      %s25 = scalar_select %p22, %s23, %s24
      %p28 = pneg %p22
      %p29 = scmp.eq.s32.totalorder %s13, 1
      %p30 = por %p28, %p29
      %p31 = scmp.ne.s32.totalorder %s23, %s26
      %p32 = scmp.eq.s32.totalorder %s13, 0
      %p33 = por %p31, %p32
      %p34 = scmp.ne.s32.totalorder %s23, %s26
      %p35 = scmp.eq.s32.totalorder %s18, 1
      %p36 = por %p34, %p35
      %p37 = scmp.ne.s32.totalorder %s26, %s27
      %p38 = scmp.eq.s32.totalorder %s18, 0
      %p39 = por %p37, %p38
      %p40 = scmp.ne.s32.totalorder %s26, %s27
      %p41 = scmp.eq.s32.totalorder %s19, 1
      %p42 = por %p40, %p41
      %p44 = scmp.ne.s32.totalorder %s27, %s43
      %p45 = scmp.eq.s32.totalorder %s19, 0
      %p46 = por %p44, %p45
      %s48 = sadd.s32 %s47, 1
      %p51 = scmp.eq.s32.totalorder %s13, 1
      %p52 = scmp.ne.s32.totalorder %s47, %s49
      %p53 = scmp.eq.s32.totalorder %s13, 0
      %p54 = por %p52, %p53
      %p55 = scmp.ne.s32.totalorder %s47, %s49
      %p56 = scmp.eq.s32.totalorder %s18, 1
      %p57 = por %p55, %p56
      %p58 = scmp.ne.s32.totalorder %s49, %s50
      %p59 = scmp.eq.s32.totalorder %s18, 0
      %p60 = por %p58, %p59
      %p61 = scmp.ne.s32.totalorder %s49, %s50
      %p62 = scmp.eq.s32.totalorder %s19, 1
      %p63 = por %p61, %p62
      %p65 = scmp.ne.s32.totalorder %s50, %s64
      %p66 = scmp.eq.s32.totalorder %s19, 0
      %p67 = por %p65, %p66
      %s69 = sadd.s32 %s68, 1
      %p72 = scmp.eq.s32.totalorder %s13, 1
      %p73 = scmp.ne.s32.totalorder %s68, %s70
      %p74 = scmp.eq.s32.totalorder %s13, 0
      %p75 = por %p73, %p74
      %p76 = scmp.ne.s32.totalorder %s68, %s70
      %p77 = scmp.eq.s32.totalorder %s18, 1
      %p78 = por %p76, %p77
      %p79 = scmp.ne.s32.totalorder %s70, %s71
      %p80 = scmp.eq.s32.totalorder %s18, 0
      %p81 = por %p79, %p80
      %p82 = scmp.ne.s32.totalorder %s70, %s71
      %p83 = scmp.eq.s32.totalorder %s19, 1
      %p84 = por %p82, %p83
      %p86 = scmp.ne.s32.totalorder %s71, %s85
      %p87 = scmp.eq.s32.totalorder %s19, 0
      %p88 = por %p86, %p87
      %s89 = ssub.s32 %s13, %s20
      %p90 = scmp.eq.s32.totalorder %s89, 0
      %s92 = sadd.s32 %s91, 1
      %s93 = scalar_select %p90, %s91, %s92
      %p96 = pneg %p90
      %p97 = scmp.eq.s32.totalorder %s13, 1
      %p98 = por %p96, %p97
      %p99 = scmp.ne.s32.totalorder %s91, %s94
      %p100 = scmp.eq.s32.totalorder %s13, 0
      %p101 = por %p99, %p100
      %p102 = scmp.ne.s32.totalorder %s91, %s94
      %p103 = scmp.eq.s32.totalorder %s18, 1
      %p104 = por %p102, %p103
      %p105 = scmp.ne.s32.totalorder %s94, %s95
      %p106 = scmp.eq.s32.totalorder %s18, 0
      %p107 = por %p105, %p106
      %p108 = scmp.ne.s32.totalorder %s94, %s95
      %p109 = scmp.eq.s32.totalorder %s19, 1
      %p110 = por %p108, %p109
      %p112 = scmp.ne.s32.totalorder %s95, %s111
      %p113 = scmp.eq.s32.totalorder %s19, 0
      %p114 = por %p112, %p113
      %s115 = ssub.s32 %s13, %s20
      %p116 = scmp.eq.s32.totalorder %s115, 0
      %s118 = sadd.s32 %s117, 1
      %s119 = scalar_select %p116, %s117, %s118
      %p122 = pneg %p116
      %p123 = scmp.eq.s32.totalorder %s13, 1
      %p124 = por %p122, %p123
      %p125 = scmp.ne.s32.totalorder %s117, %s120
      %p126 = scmp.eq.s32.totalorder %s13, 0
      %p127 = por %p125, %p126
      %p128 = scmp.ne.s32.totalorder %s117, %s120
      %p129 = scmp.eq.s32.totalorder %s18, 1
      %p130 = por %p128, %p129
      %p131 = scmp.ne.s32.totalorder %s120, %s121
      %p132 = scmp.eq.s32.totalorder %s18, 0
      %p133 = por %p131, %p132
      %p134 = scmp.ne.s32.totalorder %s120, %s121
      %p135 = scmp.eq.s32.totalorder %s19, 1
      %p136 = por %p134, %p135
      %p138 = scmp.ne.s32.totalorder %s121, %s137
      %p139 = scmp.eq.s32.totalorder %s19, 0
      %p140 = por %p138, %p139
      %p141 = scmp.le.s32.totalorder 1, %s13
      %p142 = scmp.lt.s32.totalorder %s13, 3
      %p143 = pnand %p141, %p142
      %p144 = pneg %p143
      // Predicated region
      $region9: #{double_conv_striped.2} parent=5 // pred_check
        _
      $region10: #{double_conv_striped.2} parent=5 // pred_check_branch
        %146 = sbr.rel (%p143) target = $region12
      $region11: #{double_conv_striped.2} parent=5 // pred_region
        %s147 = ssub.s32 %s13, 1
        // Predicated region
        $region13: #{double_conv_striped.2} parent=11 // pred_check
          %p148 = pneg %p60
        $region14: #{double_conv_striped.2} parent=11 // pred_check_branch
          %150 = sbr.rel (%p148) target = $region16
        $region15: #{double_conv_striped.2} parent=11 // pred_region
          %152 = vsyncadd [#allocation3], 0
          %s154 = sshll.u32 %s1, 4
          %s155 = int_to_ptr.vmem [resolvable:$true] %s154
          %157 = dma.vmem_to_smem %s155, 16, [#allocation2], [#allocation3]
        $region16: #{double_conv_striped.2} parent=11 // pred_fallthru
          _
        // Predicated region
        $region17: #{double_conv_striped.2} parent=11 // pred_check
          %p158 = pneg %p81
        $region18: #{double_conv_striped.2} parent=11 // pred_check_branch
          %160 = sbr.rel (%p158) target = $region20
        $region19: #{double_conv_striped.2} parent=11 // pred_region
          %162 = vsyncadd [#allocation5], 0
          %s164 = sshll.u32 %s2, 4
          %s165 = int_to_ptr.vmem [resolvable:$true] %s164
          %167 = dma.vmem_to_smem %s165, 16, [#allocation4], [#allocation5]
        $region20: #{double_conv_striped.2} parent=11 // pred_fallthru
          _
      $region12: #{double_conv_striped.2} parent=5 // pred_fallthru
        _
      %p168 = scmp.lt.s32.totalorder %s13, 2
      // Predicated region
      $region21: #{double_conv_striped.2} parent=5 // pred_check
        %p169 = pneg %p168
      $region22: #{double_conv_striped.2} parent=5 // pred_check_branch
        %171 = sbr.rel (%p169) target = $region24
      $region23: #{double_conv_striped.2} parent=5 // pred_region
        // Predicated region
        $region25: #{double_conv_striped.2} parent=23 // pred_check
          %p172 = pneg %p33
        $region26: #{double_conv_striped.2} parent=23 // pred_check_branch
          %174 = sbr.rel (%p172) target = $region28
        $region27: #{double_conv_striped.2} parent=23 // pred_region
          %p175 = scmp.lt.s32.totalorder %s13, 1
          %s176 = scalar_select %p175, %s13, 1
          %s177 = smul.addr %s176, 12
          %s178 = smul.addr %s177, 8
          %s179 = scalar_lea.vmem %s0, %s178
        $region28: #{double_conv_striped.2} parent=23 // pred_fallthru
          _
      $region24: #{double_conv_striped.2} parent=5 // pred_fallthru
        _
      %p180 = scmp.le.s32.totalorder 1, %s13
      %p181 = scmp.lt.s32.totalorder %s13, 3
      %p182 = pnand %p180, %p181
      %p183 = pneg %p182
      // Predicated region
      $region29: #{double_conv_striped.2} parent=5 // pred_check
        _
      $region30: #{double_conv_striped.2} parent=5 // pred_check_branch
        %185 = sbr.rel (%p182) target = $region32
      $region31: #{double_conv_striped.2} parent=5 // pred_region
        %s186 = ssub.s32 %s13, 1
        // Predicated region
        $region33: #{double_conv_striped.2} parent=31 // pred_check
          %p187 = pneg %p60
        $region34: #{double_conv_striped.2} parent=31 // pred_check_branch
          %189 = sbr.rel (%p187) target = $region36
        $region35: #{double_conv_striped.2} parent=31 // pred_region
          %191 = dma.done [#allocation3], 16
        $region36: #{double_conv_striped.2} parent=31 // pred_fallthru
          _
        // Predicated region
        $region37: #{double_conv_striped.2} parent=31 // pred_check
          %p192 = pneg %p81
        $region38: #{double_conv_striped.2} parent=31 // pred_check_branch
          %194 = sbr.rel (%p192) target = $region40
        $region39: #{double_conv_striped.2} parent=31 // pred_region
          %196 = dma.done [#allocation5], 16
        $region40: #{double_conv_striped.2} parent=31 // pred_fallthru
          _
        %197 = sfence
        %p198 = scmp.lt.s32.totalorder %s18, 1
        %s199 = scalar_select %p198, %s18, 1
        %s200 = smul.addr %s199, 12
        %s201 = smul.addr %s200, 8
        %s202 = scalar_lea.vmem %s0, %s201
        %p203 = pneg %p39
        %p204 = pneg %p36
        %p205 = pneg %p60
        %p206 = pneg %p57
        %p207 = pneg %p81
        %p208 = pneg %p78
        %p209 = pneg %p107
        %p210 = pneg %p104
        %p211 = scmp.lt.s32.totalorder %s18, 1
        %s212 = scalar_select %p211, %s18, 1
        %s213 = smul.addr %s212, 8
        %s214 = smul.addr %s213, 8
        %s215 = scalar_lea.vmem %s3, %s214
        %p216 = pneg %p133
        %p217 = pneg %p130
        %p218 = scmp.lt.s32.totalorder %s18, 1
        %s219 = scalar_select %p218, %s18, 1
        %s220 = smul.addr %s219, 4
        %s221 = scalar_lea.vmem %s4, %s220
        %p222 = scmp.lt.s32.totalorder %s18, 1
        %s223 = scalar_select %p222, %s18, 1
        %s224 = smul.addr %s223, 12
        %s225 = smul.addr %s224, 8
        %s226 = scalar_lea.vmem %s0, %s225
        %p227 = scmp.lt.s32.totalorder %s18, 1
        %s228 = scalar_select %p227, %s18, 1
        %s229 = smul.addr %s228, 8
        %s230 = smul.addr %s229, 8
        %s231 = scalar_lea.vmem %s3, %s230
        %p232 = scmp.lt.s32.totalorder %s18, 1
        %s233 = scalar_select %p232, %s18, 1
        %s234 = smul.addr %s233, 4
        %s235 = scalar_lea.vmem %s4, %s234
        %v236 = vld [vmem:[%s226] sm:$0xff]
        %v237 = vld [vmem:[%s226 + $0x8] sm:$0xff]
        %v238 = vld [vmem:[%s226 + $0x10] sm:$0x3]
        %s239 = scalar_lea.vmem %s226, 24
        %v240 = vld [vmem:[%s239] sm:$0xff]
        %v241 = vld [vmem:[%s239 + $0x8] sm:$0xff]
        %v242 = vld [vmem:[%s239 + $0x10] sm:$0x3]
        %s243 = scalar_lea.vmem %s226, 48
        %v244 = vld [vmem:[%s243] sm:$0xff]
        %v245 = vld [vmem:[%s243 + $0x8] sm:$0xff]
        %v246 = vld [vmem:[%s243 + $0x10] sm:$0x3]
        %s247 = scalar_lea.vmem %s226, 72
        %v248 = vld [vmem:[%s247] sm:$0xff]
        %v249 = vld [vmem:[%s247 + $0x8] sm:$0xff]
        %v250 = vld [vmem:[%s247 + $0x10] sm:$0x3]
        %s251 = sld [smem:[#allocation2]]
        %v252 = vstv %s251
        %v253 = vmul.f32 %v236, %v252
        %v254 = vmul.f32 %v237, %v252
        %v255 = vmul.f32 %v238, %v252
        %s256 = sld [smem:[#allocation2 + $0x1]]
        %v257 = vstv %s256
        %v258 = vmul.f32 %v236, %v257
        %v259 = vmul.f32 %v237, %v257
        %v260 = vmul.f32 %v238, %v257
        %264 = vrot.lane.b32.xlu0 %v258, 127
        %v265 = vpop.permute.xlu0 %264
        %266 = vrot.lane.b32.xlu0 %v259, 127
        %v267 = vpop.permute.xlu0 %266
        %268 = vrot.lane.b32.xlu0 %v260, 127
        %v269 = vpop.permute.xlu0 %268
        %v273 = vadd.f32 %v253, %v265
        %v274 = vadd.f32 %v254, %v267
        %v275 = vadd.f32 %v255, %v269
        %s276 = sld [smem:[#allocation2 + $0x2]]
        %v277 = vstv %s276
        %v278 = vmul.f32 %v236, %v277
        %v279 = vmul.f32 %v237, %v277
        %v280 = vmul.f32 %v238, %v277
        %284 = vrot.lane.b32.xlu0 %v278, 126
        %v285 = vpop.permute.xlu0 %284
        %286 = vrot.lane.b32.xlu0 %v279, 126
        %v287 = vpop.permute.xlu0 %286
        %288 = vrot.lane.b32.xlu0 %v280, 126
        %v289 = vpop.permute.xlu0 %288
        %v293 = vadd.f32 %v273, %v285
        %v294 = vadd.f32 %v274, %v287
        %v295 = vadd.f32 %v275, %v289
        %s296 = sld [smem:[#allocation2 + $0x3]]
        %v297 = vstv %s296
        %v298 = vmul.f32 %v240, %v297
        %v299 = vmul.f32 %v241, %v297
        %v300 = vmul.f32 %v242, %v297
        %v301 = vadd.f32 %v293, %v298
        %v302 = vadd.f32 %v294, %v299
        %v303 = vadd.f32 %v295, %v300
        %s304 = sld [smem:[#allocation2 + $0x4]]
        %v305 = vstv %s304
        %v306 = vmul.f32 %v240, %v305
        %v307 = vmul.f32 %v241, %v305
        %v308 = vmul.f32 %v242, %v305
        %312 = vrot.lane.b32.xlu0 %v306, 127
        %v313 = vpop.permute.xlu0 %312
        %314 = vrot.lane.b32.xlu0 %v307, 127
        %v315 = vpop.permute.xlu0 %314
        %316 = vrot.lane.b32.xlu0 %v308, 127
        %v317 = vpop.permute.xlu0 %316
        %v321 = vadd.f32 %v301, %v313
        %v322 = vadd.f32 %v302, %v315
        %v323 = vadd.f32 %v303, %v317
        %s324 = sld [smem:[#allocation2 + $0x5]]
        %v325 = vstv %s324
        %v326 = vmul.f32 %v240, %v325
        %v327 = vmul.f32 %v241, %v325
        %v328 = vmul.f32 %v242, %v325
        %332 = vrot.lane.b32.xlu0 %v326, 126
        %v333 = vpop.permute.xlu0 %332
        %334 = vrot.lane.b32.xlu0 %v327, 126
        %v335 = vpop.permute.xlu0 %334
        %336 = vrot.lane.b32.xlu0 %v328, 126
        %v337 = vpop.permute.xlu0 %336
        %v341 = vadd.f32 %v321, %v333
        %v342 = vadd.f32 %v322, %v335
        %v343 = vadd.f32 %v323, %v337
        %s344 = sld [smem:[#allocation2 + $0x6]]
        %v345 = vstv %s344
        %v346 = vmul.f32 %v244, %v345
        %v347 = vmul.f32 %v245, %v345
        %v348 = vmul.f32 %v246, %v345
        %v349 = vadd.f32 %v341, %v346
        %v350 = vadd.f32 %v342, %v347
        %v351 = vadd.f32 %v343, %v348
        %s352 = sld [smem:[#allocation2 + $0x7]]
        %v353 = vstv %s352
        %v354 = vmul.f32 %v244, %v353
        %v355 = vmul.f32 %v245, %v353
        %v356 = vmul.f32 %v246, %v353
        %360 = vrot.lane.b32.xlu0 %v354, 127
        %v361 = vpop.permute.xlu0 %360
        %362 = vrot.lane.b32.xlu0 %v355, 127
        %v363 = vpop.permute.xlu0 %362
        %364 = vrot.lane.b32.xlu0 %v356, 127
        %v365 = vpop.permute.xlu0 %364
        %v369 = vadd.f32 %v349, %v361
        %v370 = vadd.f32 %v350, %v363
        %v371 = vadd.f32 %v351, %v365
        %s372 = sld [smem:[#allocation2 + $0x8]]
        %v373 = vstv %s372
        %v374 = vmul.f32 %v244, %v373
        %v375 = vmul.f32 %v245, %v373
        %v376 = vmul.f32 %v246, %v373
        %380 = vrot.lane.b32.xlu0 %v374, 126
        %v381 = vpop.permute.xlu0 %380
        %382 = vrot.lane.b32.xlu0 %v375, 126
        %v383 = vpop.permute.xlu0 %382
        %384 = vrot.lane.b32.xlu0 %v376, 126
        %v385 = vpop.permute.xlu0 %384
        %v389 = vadd.f32 %v369, %v381
        %v390 = vadd.f32 %v370, %v383
        %v391 = vadd.f32 %v371, %v385
        %s392 = sld [smem:[#allocation2 + $0x9]]
        %v393 = vstv %s392
        %v394 = vmul.f32 %v248, %v393
        %v395 = vmul.f32 %v249, %v393
        %v396 = vmul.f32 %v250, %v393
        %v397 = vadd.f32 %v389, %v394
        %v398 = vadd.f32 %v390, %v395
        %v399 = vadd.f32 %v391, %v396
        %s400 = sld [smem:[#allocation2 + $0xa]]
        %v401 = vstv %s400
        %v402 = vmul.f32 %v248, %v401
        %v403 = vmul.f32 %v249, %v401
        %v404 = vmul.f32 %v250, %v401
        %408 = vrot.lane.b32.xlu0 %v402, 127
        %v409 = vpop.permute.xlu0 %408
        %410 = vrot.lane.b32.xlu0 %v403, 127
        %v411 = vpop.permute.xlu0 %410
        %412 = vrot.lane.b32.xlu0 %v404, 127
        %v413 = vpop.permute.xlu0 %412
        %v417 = vadd.f32 %v397, %v409
        %v418 = vadd.f32 %v398, %v411
        %v419 = vadd.f32 %v399, %v413
        %s420 = sld [smem:[#allocation2 + $0xb]]
        %v421 = vstv %s420
        %v422 = vmul.f32 %v248, %v421
        %v423 = vmul.f32 %v249, %v421
        %v424 = vmul.f32 %v250, %v421
        %428 = vrot.lane.b32.xlu0 %v422, 126
        %v429 = vpop.permute.xlu0 %428
        %430 = vrot.lane.b32.xlu0 %v423, 126
        %v431 = vpop.permute.xlu0 %430
        %432 = vrot.lane.b32.xlu0 %v424, 126
        %v433 = vpop.permute.xlu0 %432
        %v437 = vadd.f32 %v417, %v429
        %v438 = vadd.f32 %v418, %v431
        %v439 = vadd.f32 %v419, %v433
        %s440 = sld [smem:[#allocation2 + $0xc]]
        %v441 = vstv %s440
        %v442 = vmul.f32 %v236, %v441
        %v443 = vmul.f32 %v237, %v441
        %v444 = vmul.f32 %v238, %v441
        %s445 = sld [smem:[#allocation2 + $0xd]]
        %v446 = vstv %s445
        %v447 = vmul.f32 %v236, %v446
        %v448 = vmul.f32 %v237, %v446
        %v449 = vmul.f32 %v238, %v446
        %453 = vrot.lane.b32.xlu0 %v447, 127
        %v454 = vpop.permute.xlu0 %453
        %455 = vrot.lane.b32.xlu0 %v448, 127
        %v456 = vpop.permute.xlu0 %455
        %457 = vrot.lane.b32.xlu0 %v449, 127
        %v458 = vpop.permute.xlu0 %457
        %v462 = vadd.f32 %v442, %v454
        %v463 = vadd.f32 %v443, %v456
        %v464 = vadd.f32 %v444, %v458
        %s465 = sld [smem:[#allocation2 + $0xe]]
        %v466 = vstv %s465
        %v467 = vmul.f32 %v236, %v466
        %v468 = vmul.f32 %v237, %v466
        %v469 = vmul.f32 %v238, %v466
        %473 = vrot.lane.b32.xlu0 %v467, 126
        %v474 = vpop.permute.xlu0 %473
        %475 = vrot.lane.b32.xlu0 %v468, 126
        %v476 = vpop.permute.xlu0 %475
        %477 = vrot.lane.b32.xlu0 %v469, 126
        %v478 = vpop.permute.xlu0 %477
        %v482 = vadd.f32 %v462, %v474
        %v483 = vadd.f32 %v463, %v476
        %v484 = vadd.f32 %v464, %v478
        %s485 = sld [smem:[#allocation2 + $0xf]]
        %v486 = vstv %s485
        %v487 = vmul.f32 %v240, %v486
        %v488 = vmul.f32 %v241, %v486
        %v489 = vmul.f32 %v242, %v486
        %v490 = vadd.f32 %v482, %v487
        %v491 = vadd.f32 %v483, %v488
        %v492 = vadd.f32 %v484, %v489
        %s493 = sld [smem:[#allocation2 + $0x10]]
        %v494 = vstv %s493
        %v495 = vmul.f32 %v240, %v494
        %v496 = vmul.f32 %v241, %v494
        %v497 = vmul.f32 %v242, %v494
        %501 = vrot.lane.b32.xlu0 %v495, 127
        %v502 = vpop.permute.xlu0 %501
        %503 = vrot.lane.b32.xlu0 %v496, 127
        %v504 = vpop.permute.xlu0 %503
        %505 = vrot.lane.b32.xlu0 %v497, 127
        %v506 = vpop.permute.xlu0 %505
        %v510 = vadd.f32 %v490, %v502
        %v511 = vadd.f32 %v491, %v504
        %v512 = vadd.f32 %v492, %v506
        %s513 = sld [smem:[#allocation2 + $0x11]]
        %v514 = vstv %s513
        %v515 = vmul.f32 %v240, %v514
        %v516 = vmul.f32 %v241, %v514
        %v517 = vmul.f32 %v242, %v514
        %521 = vrot.lane.b32.xlu0 %v515, 126
        %v522 = vpop.permute.xlu0 %521
        %523 = vrot.lane.b32.xlu0 %v516, 126
        %v524 = vpop.permute.xlu0 %523
        %525 = vrot.lane.b32.xlu0 %v517, 126
        %v526 = vpop.permute.xlu0 %525
        %v530 = vadd.f32 %v510, %v522
        %v531 = vadd.f32 %v511, %v524
        %v532 = vadd.f32 %v512, %v526
        %s533 = sld [smem:[#allocation2 + $0x12]]
        %v534 = vstv %s533
        %v535 = vmul.f32 %v244, %v534
        %v536 = vmul.f32 %v245, %v534
        %v537 = vmul.f32 %v246, %v534
        %v538 = vadd.f32 %v530, %v535
        %v539 = vadd.f32 %v531, %v536
        %v540 = vadd.f32 %v532, %v537
        %s541 = sld [smem:[#allocation2 + $0x13]]
        %v542 = vstv %s541
        %v543 = vmul.f32 %v244, %v542
        %v544 = vmul.f32 %v245, %v542
        %v545 = vmul.f32 %v246, %v542
        %549 = vrot.lane.b32.xlu0 %v543, 127
        %v550 = vpop.permute.xlu0 %549
        %551 = vrot.lane.b32.xlu0 %v544, 127
        %v552 = vpop.permute.xlu0 %551
        %553 = vrot.lane.b32.xlu0 %v545, 127
        %v554 = vpop.permute.xlu0 %553
        %v558 = vadd.f32 %v538, %v550
        %v559 = vadd.f32 %v539, %v552
        %v560 = vadd.f32 %v540, %v554
        %s561 = sld [smem:[#allocation2 + $0x14]]
        %v562 = vstv %s561
        %v563 = vmul.f32 %v244, %v562
        %v564 = vmul.f32 %v245, %v562
        %v565 = vmul.f32 %v246, %v562
        %569 = vrot.lane.b32.xlu0 %v563, 126
        %v570 = vpop.permute.xlu0 %569
        %571 = vrot.lane.b32.xlu0 %v564, 126
        %v572 = vpop.permute.xlu0 %571
        %573 = vrot.lane.b32.xlu0 %v565, 126
        %v574 = vpop.permute.xlu0 %573
        %v578 = vadd.f32 %v558, %v570
        %v579 = vadd.f32 %v559, %v572
        %v580 = vadd.f32 %v560, %v574
        %s581 = sld [smem:[#allocation2 + $0x15]]
        %v582 = vstv %s581
        %v583 = vmul.f32 %v248, %v582
        %v584 = vmul.f32 %v249, %v582
        %v585 = vmul.f32 %v250, %v582
        %v586 = vadd.f32 %v578, %v583
        %v587 = vadd.f32 %v579, %v584
        %v588 = vadd.f32 %v580, %v585
        %s589 = sld [smem:[#allocation2 + $0x16]]
        %v590 = vstv %s589
        %v591 = vmul.f32 %v248, %v590
        %v592 = vmul.f32 %v249, %v590
        %v593 = vmul.f32 %v250, %v590
        %597 = vrot.lane.b32.xlu0 %v591, 127
        %v598 = vpop.permute.xlu0 %597
        %599 = vrot.lane.b32.xlu0 %v592, 127
        %v600 = vpop.permute.xlu0 %599
        %601 = vrot.lane.b32.xlu0 %v593, 127
        %v602 = vpop.permute.xlu0 %601
        %v606 = vadd.f32 %v586, %v598
        %v607 = vadd.f32 %v587, %v600
        %v608 = vadd.f32 %v588, %v602
        %s609 = sld [smem:[#allocation2 + $0x17]]
        %v610 = vstv %s609
        %v611 = vmul.f32 %v248, %v610
        %v612 = vmul.f32 %v249, %v610
        %v613 = vmul.f32 %v250, %v610
        %617 = vrot.lane.b32.xlu0 %v611, 126
        %v618 = vpop.permute.xlu0 %617
        %619 = vrot.lane.b32.xlu0 %v612, 126
        %v620 = vpop.permute.xlu0 %619
        %621 = vrot.lane.b32.xlu0 %v613, 126
        %v622 = vpop.permute.xlu0 %621
        %v626 = vadd.f32 %v606, %v618
        %v627 = vadd.f32 %v607, %v620
        %v628 = vadd.f32 %v608, %v622
        %s629 = sld [smem:[#allocation2 + $0x18]]
        %v630 = vstv %s629
        %v631 = vmul.f32 %v236, %v630
        %v632 = vmul.f32 %v237, %v630
        %v633 = vmul.f32 %v238, %v630
        %s634 = sld [smem:[#allocation2 + $0x19]]
        %v635 = vstv %s634
        %v636 = vmul.f32 %v236, %v635
        %v637 = vmul.f32 %v237, %v635
        %v638 = vmul.f32 %v238, %v635
        %642 = vrot.lane.b32.xlu0 %v636, 127
        %v643 = vpop.permute.xlu0 %642
        %644 = vrot.lane.b32.xlu0 %v637, 127
        %v645 = vpop.permute.xlu0 %644
        %646 = vrot.lane.b32.xlu0 %v638, 127
        %v647 = vpop.permute.xlu0 %646
        %v651 = vadd.f32 %v631, %v643
        %v652 = vadd.f32 %v632, %v645
        %v653 = vadd.f32 %v633, %v647
        %s654 = sld [smem:[#allocation2 + $0x1a]]
        %v655 = vstv %s654
        %v656 = vmul.f32 %v236, %v655
        %v657 = vmul.f32 %v237, %v655
        %v658 = vmul.f32 %v238, %v655
        %662 = vrot.lane.b32.xlu0 %v656, 126
        %v663 = vpop.permute.xlu0 %662
        %664 = vrot.lane.b32.xlu0 %v657, 126
        %v665 = vpop.permute.xlu0 %664
        %666 = vrot.lane.b32.xlu0 %v658, 126
        %v667 = vpop.permute.xlu0 %666
        %v671 = vadd.f32 %v651, %v663
        %v672 = vadd.f32 %v652, %v665
        %v673 = vadd.f32 %v653, %v667
        %s674 = sld [smem:[#allocation2 + $0x1b]]
        %v675 = vstv %s674
        %v676 = vmul.f32 %v240, %v675
        %v677 = vmul.f32 %v241, %v675
        %v678 = vmul.f32 %v242, %v675
        %v679 = vadd.f32 %v671, %v676
        %v680 = vadd.f32 %v672, %v677
        %v681 = vadd.f32 %v673, %v678
        %s682 = sld [smem:[#allocation2 + $0x1c]]
        %v683 = vstv %s682
        %v684 = vmul.f32 %v240, %v683
        %v685 = vmul.f32 %v241, %v683
        %v686 = vmul.f32 %v242, %v683
        %690 = vrot.lane.b32.xlu0 %v684, 127
        %v691 = vpop.permute.xlu0 %690
        %692 = vrot.lane.b32.xlu0 %v685, 127
        %v693 = vpop.permute.xlu0 %692
        %694 = vrot.lane.b32.xlu0 %v686, 127
        %v695 = vpop.permute.xlu0 %694
        %v699 = vadd.f32 %v679, %v691
        %v700 = vadd.f32 %v680, %v693
        %v701 = vadd.f32 %v681, %v695
        %s702 = sld [smem:[#allocation2 + $0x1d]]
        %v703 = vstv %s702
        %v704 = vmul.f32 %v240, %v703
        %v705 = vmul.f32 %v241, %v703
        %v706 = vmul.f32 %v242, %v703
        %710 = vrot.lane.b32.xlu0 %v704, 126
        %v711 = vpop.permute.xlu0 %710
        %712 = vrot.lane.b32.xlu0 %v705, 126
        %v713 = vpop.permute.xlu0 %712
        %714 = vrot.lane.b32.xlu0 %v706, 126
        %v715 = vpop.permute.xlu0 %714
        %v719 = vadd.f32 %v699, %v711
        %v720 = vadd.f32 %v700, %v713
        %v721 = vadd.f32 %v701, %v715
        %s722 = sld [smem:[#allocation2 + $0x1e]]
        %v723 = vstv %s722
        %v724 = vmul.f32 %v244, %v723
        %v725 = vmul.f32 %v245, %v723
        %v726 = vmul.f32 %v246, %v723
        %v727 = vadd.f32 %v719, %v724
        %v728 = vadd.f32 %v720, %v725
        %v729 = vadd.f32 %v721, %v726
        %s730 = sld [smem:[#allocation2 + $0x1f]]
        %v731 = vstv %s730
        %v732 = vmul.f32 %v244, %v731
        %v733 = vmul.f32 %v245, %v731
        %v734 = vmul.f32 %v246, %v731
        %738 = vrot.lane.b32.xlu0 %v732, 127
        %v739 = vpop.permute.xlu0 %738
        %740 = vrot.lane.b32.xlu0 %v733, 127
        %v741 = vpop.permute.xlu0 %740
        %742 = vrot.lane.b32.xlu0 %v734, 127
        %v743 = vpop.permute.xlu0 %742
        %v747 = vadd.f32 %v727, %v739
        %v748 = vadd.f32 %v728, %v741
        %v749 = vadd.f32 %v729, %v743
        %s750 = sld [smem:[#allocation2 + $0x20]]
        %v751 = vstv %s750
        %v752 = vmul.f32 %v244, %v751
        %v753 = vmul.f32 %v245, %v751
        %v754 = vmul.f32 %v246, %v751
        %758 = vrot.lane.b32.xlu0 %v752, 126
        %v759 = vpop.permute.xlu0 %758
        %760 = vrot.lane.b32.xlu0 %v753, 126
        %v761 = vpop.permute.xlu0 %760
        %762 = vrot.lane.b32.xlu0 %v754, 126
        %v763 = vpop.permute.xlu0 %762
        %v767 = vadd.f32 %v747, %v759
        %v768 = vadd.f32 %v748, %v761
        %v769 = vadd.f32 %v749, %v763
        %s770 = sld [smem:[#allocation2 + $0x21]]
        %v771 = vstv %s770
        %v772 = vmul.f32 %v248, %v771
        %v773 = vmul.f32 %v249, %v771
        %v774 = vmul.f32 %v250, %v771
        %v775 = vadd.f32 %v767, %v772
        %v776 = vadd.f32 %v768, %v773
        %v777 = vadd.f32 %v769, %v774
        %s778 = sld [smem:[#allocation2 + $0x22]]
        %v779 = vstv %s778
        %v780 = vmul.f32 %v248, %v779
        %v781 = vmul.f32 %v249, %v779
        %v782 = vmul.f32 %v250, %v779
        %786 = vrot.lane.b32.xlu0 %v780, 127
        %v787 = vpop.permute.xlu0 %786
        %788 = vrot.lane.b32.xlu0 %v781, 127
        %v789 = vpop.permute.xlu0 %788
        %790 = vrot.lane.b32.xlu0 %v782, 127
        %v791 = vpop.permute.xlu0 %790
        %v795 = vadd.f32 %v775, %v787
        %v796 = vadd.f32 %v776, %v789
        %v797 = vadd.f32 %v777, %v791
        %s798 = sld [smem:[#allocation2 + $0x23]]
        %v799 = vstv %s798
        %v800 = vmul.f32 %v248, %v799
        %v801 = vmul.f32 %v249, %v799
        %v802 = vmul.f32 %v250, %v799
        %806 = vrot.lane.b32.xlu0 %v800, 126
        %v807 = vpop.permute.xlu0 %806
        %808 = vrot.lane.b32.xlu0 %v801, 126
        %v809 = vpop.permute.xlu0 %808
        %810 = vrot.lane.b32.xlu0 %v802, 126
        %v811 = vpop.permute.xlu0 %810
        %v815 = vadd.f32 %v795, %v807
        %v816 = vadd.f32 %v796, %v809
        %v817 = vadd.f32 %v797, %v811
        %s818 = sld [smem:[#allocation2 + $0x24]]
        %v819 = vstv %s818
        %v820 = vmul.f32 %v236, %v819
        %v821 = vmul.f32 %v237, %v819
        %v822 = vmul.f32 %v238, %v819
        %s823 = sld [smem:[#allocation2 + $0x25]]
        %v824 = vstv %s823
        %v825 = vmul.f32 %v236, %v824
        %v826 = vmul.f32 %v237, %v824
        %v827 = vmul.f32 %v238, %v824
        %831 = vrot.lane.b32.xlu0 %v825, 127
        %v832 = vpop.permute.xlu0 %831
        %833 = vrot.lane.b32.xlu0 %v826, 127
        %v834 = vpop.permute.xlu0 %833
        %835 = vrot.lane.b32.xlu0 %v827, 127
        %v836 = vpop.permute.xlu0 %835
        %v840 = vadd.f32 %v820, %v832
        %v841 = vadd.f32 %v821, %v834
        %v842 = vadd.f32 %v822, %v836
        %s843 = sld [smem:[#allocation2 + $0x26]]
        %v844 = vstv %s843
        %v845 = vmul.f32 %v236, %v844
        %v846 = vmul.f32 %v237, %v844
        %v847 = vmul.f32 %v238, %v844
        %851 = vrot.lane.b32.xlu0 %v845, 126
        %v852 = vpop.permute.xlu0 %851
        %853 = vrot.lane.b32.xlu0 %v846, 126
        %v854 = vpop.permute.xlu0 %853
        %855 = vrot.lane.b32.xlu0 %v847, 126
        %v856 = vpop.permute.xlu0 %855
        %v860 = vadd.f32 %v840, %v852
        %v861 = vadd.f32 %v841, %v854
        %v862 = vadd.f32 %v842, %v856
        %s863 = sld [smem:[#allocation2 + $0x27]]
        %v864 = vstv %s863
        %v865 = vmul.f32 %v240, %v864
        %v866 = vmul.f32 %v241, %v864
        %v867 = vmul.f32 %v242, %v864
        %v868 = vadd.f32 %v860, %v865
        %v869 = vadd.f32 %v861, %v866
        %v870 = vadd.f32 %v862, %v867
        %s871 = sld [smem:[#allocation2 + $0x28]]
        %v872 = vstv %s871
        %v873 = vmul.f32 %v240, %v872
        %v874 = vmul.f32 %v241, %v872
        %v875 = vmul.f32 %v242, %v872
        %879 = vrot.lane.b32.xlu0 %v873, 127
        %v880 = vpop.permute.xlu0 %879
        %881 = vrot.lane.b32.xlu0 %v874, 127
        %v882 = vpop.permute.xlu0 %881
        %883 = vrot.lane.b32.xlu0 %v875, 127
        %v884 = vpop.permute.xlu0 %883
        %v888 = vadd.f32 %v868, %v880
        %v889 = vadd.f32 %v869, %v882
        %v890 = vadd.f32 %v870, %v884
        %s891 = sld [smem:[#allocation2 + $0x29]]
        %v892 = vstv %s891
        %v893 = vmul.f32 %v240, %v892
        %v894 = vmul.f32 %v241, %v892
        %v895 = vmul.f32 %v242, %v892
        %899 = vrot.lane.b32.xlu0 %v893, 126
        %v900 = vpop.permute.xlu0 %899
        %901 = vrot.lane.b32.xlu0 %v894, 126
        %v902 = vpop.permute.xlu0 %901
        %903 = vrot.lane.b32.xlu0 %v895, 126
        %v904 = vpop.permute.xlu0 %903
        %v908 = vadd.f32 %v888, %v900
        %v909 = vadd.f32 %v889, %v902
        %v910 = vadd.f32 %v890, %v904
        %s911 = sld [smem:[#allocation2 + $0x2a]]
        %v912 = vstv %s911
        %v913 = vmul.f32 %v244, %v912
        %v914 = vmul.f32 %v245, %v912
        %v915 = vmul.f32 %v246, %v912
        %v916 = vadd.f32 %v908, %v913
        %v917 = vadd.f32 %v909, %v914
        %v918 = vadd.f32 %v910, %v915
        %s919 = sld [smem:[#allocation2 + $0x2b]]
        %v920 = vstv %s919
        %v921 = vmul.f32 %v244, %v920
        %v922 = vmul.f32 %v245, %v920
        %v923 = vmul.f32 %v246, %v920
        %927 = vrot.lane.b32.xlu0 %v921, 127
        %v928 = vpop.permute.xlu0 %927
        %929 = vrot.lane.b32.xlu0 %v922, 127
        %v930 = vpop.permute.xlu0 %929
        %931 = vrot.lane.b32.xlu0 %v923, 127
        %v932 = vpop.permute.xlu0 %931
        %v936 = vadd.f32 %v916, %v928
        %v937 = vadd.f32 %v917, %v930
        %v938 = vadd.f32 %v918, %v932
        %s939 = sld [smem:[#allocation2 + $0x2c]]
        %v940 = vstv %s939
        %v941 = vmul.f32 %v244, %v940
        %v942 = vmul.f32 %v245, %v940
        %v943 = vmul.f32 %v246, %v940
        %947 = vrot.lane.b32.xlu0 %v941, 126
        %v948 = vpop.permute.xlu0 %947
        %949 = vrot.lane.b32.xlu0 %v942, 126
        %v950 = vpop.permute.xlu0 %949
        %951 = vrot.lane.b32.xlu0 %v943, 126
        %v952 = vpop.permute.xlu0 %951
        %v956 = vadd.f32 %v936, %v948
        %v957 = vadd.f32 %v937, %v950
        %v958 = vadd.f32 %v938, %v952
        %s959 = sld [smem:[#allocation2 + $0x2d]]
        %v960 = vstv %s959
        %v961 = vmul.f32 %v248, %v960
        %v962 = vmul.f32 %v249, %v960
        %v963 = vmul.f32 %v250, %v960
        %v964 = vadd.f32 %v956, %v961
        %v965 = vadd.f32 %v957, %v962
        %v966 = vadd.f32 %v958, %v963
        %s967 = sld [smem:[#allocation2 + $0x2e]]
        %v968 = vstv %s967
        %v969 = vmul.f32 %v248, %v968
        %v970 = vmul.f32 %v249, %v968
        %v971 = vmul.f32 %v250, %v968
        %975 = vrot.lane.b32.xlu0 %v969, 127
        %v976 = vpop.permute.xlu0 %975
        %977 = vrot.lane.b32.xlu0 %v970, 127
        %v978 = vpop.permute.xlu0 %977
        %979 = vrot.lane.b32.xlu0 %v971, 127
        %v980 = vpop.permute.xlu0 %979
        %v984 = vadd.f32 %v964, %v976
        %v985 = vadd.f32 %v965, %v978
        %v986 = vadd.f32 %v966, %v980
        %s987 = sld [smem:[#allocation2 + $0x2f]]
        %v988 = vstv %s987
        %v989 = vmul.f32 %v248, %v988
        %v990 = vmul.f32 %v249, %v988
        %v991 = vmul.f32 %v250, %v988
        %995 = vrot.lane.b32.xlu0 %v989, 126
        %v996 = vpop.permute.xlu0 %995
        %997 = vrot.lane.b32.xlu0 %v990, 126
        %v998 = vpop.permute.xlu0 %997
        %999 = vrot.lane.b32.xlu0 %v991, 126
        %v1000 = vpop.permute.xlu0 %999
        %v1004 = vadd.f32 %v984, %v996
        %v1005 = vadd.f32 %v985, %v998
        %v1006 = vadd.f32 %v986, %v1000
        %s1007 = sld [smem:[#allocation4]]
        %v1008 = vstv %s1007
        %v1009 = vmul.f32 %v437, %v1008
        %v1010 = vmul.f32 %v438, %v1008
        %s1011 = sld [smem:[#allocation4 + $0x1]]
        %v1012 = vstv %s1011
        %v1013 = vmul.f32 %v437, %v1012
        %v1014 = vmul.f32 %v438, %v1012
        %v1015 = vmul.f32 %v439, %v1012
        %vm1019 = vcmask 1046528
        %v1020 = vrot.slane %v1013, 1
        %v1021 = vrot.slane %v1014, 1
        %v1022 = vsel %vm1019, %v1020, %v1021
        %v1023 = vrot.slane %v1015, 1
        %v1024 = vsel %vm1019, %v1021, %v1023
        %v1027 = vadd.f32 %v1009, %v1022
        %v1028 = vadd.f32 %v1010, %v1024
        %s1029 = sld [smem:[#allocation4 + $0x2]]
        %v1030 = vstv %s1029
        %v1031 = vmul.f32 %v437, %v1030
        %v1032 = vmul.f32 %v438, %v1030
        %v1033 = vmul.f32 %v439, %v1030
        %vm1037 = vcmask 1045504
        %v1038 = vrot.slane %v1031, 2
        %v1039 = vrot.slane %v1032, 2
        %v1040 = vsel %vm1037, %v1038, %v1039
        %v1041 = vrot.slane %v1033, 2
        %v1042 = vsel %vm1037, %v1039, %v1041
        %v1045 = vadd.f32 %v1027, %v1040
        %v1046 = vadd.f32 %v1028, %v1042
        %s1047 = sld [smem:[#allocation4 + $0x3]]
        %v1048 = vstv %s1047
        %v1049 = vmul.f32 %v626, %v1048
        %v1050 = vmul.f32 %v627, %v1048
        %v1051 = vadd.f32 %v1045, %v1049
        %v1052 = vadd.f32 %v1046, %v1050
        %s1053 = sld [smem:[#allocation4 + $0x4]]
        %v1054 = vstv %s1053
        %v1055 = vmul.f32 %v626, %v1054
        %v1056 = vmul.f32 %v627, %v1054
        %v1057 = vmul.f32 %v628, %v1054
        %v1061 = vrot.slane %v1055, 1
        %v1062 = vrot.slane %v1056, 1
        %v1063 = vsel %vm1019, %v1061, %v1062
        %v1064 = vrot.slane %v1057, 1
        %v1065 = vsel %vm1019, %v1062, %v1064
        %v1068 = vadd.f32 %v1051, %v1063
        %v1069 = vadd.f32 %v1052, %v1065
        %s1070 = sld [smem:[#allocation4 + $0x5]]
        %v1071 = vstv %s1070
        %v1072 = vmul.f32 %v626, %v1071
        %v1073 = vmul.f32 %v627, %v1071
        %v1074 = vmul.f32 %v628, %v1071
        %v1078 = vrot.slane %v1072, 2
        %v1079 = vrot.slane %v1073, 2
        %v1080 = vsel %vm1037, %v1078, %v1079
        %v1081 = vrot.slane %v1074, 2
        %v1082 = vsel %vm1037, %v1079, %v1081
        %v1085 = vadd.f32 %v1068, %v1080
        %v1086 = vadd.f32 %v1069, %v1082
        %s1087 = sld [smem:[#allocation4 + $0x6]]
        %v1088 = vstv %s1087
        %v1089 = vmul.f32 %v815, %v1088
        %v1090 = vmul.f32 %v816, %v1088
        %v1091 = vadd.f32 %v1085, %v1089
        %v1092 = vadd.f32 %v1086, %v1090
        %s1093 = sld [smem:[#allocation4 + $0x7]]
        %v1094 = vstv %s1093
        %v1095 = vmul.f32 %v815, %v1094
        %v1096 = vmul.f32 %v816, %v1094
        %v1097 = vmul.f32 %v817, %v1094
        %v1101 = vrot.slane %v1095, 1
        %v1102 = vrot.slane %v1096, 1
        %v1103 = vsel %vm1019, %v1101, %v1102
        %v1104 = vrot.slane %v1097, 1
        %v1105 = vsel %vm1019, %v1102, %v1104
        %v1108 = vadd.f32 %v1091, %v1103
        %v1109 = vadd.f32 %v1092, %v1105
        %s1110 = sld [smem:[#allocation4 + $0x8]]
        %v1111 = vstv %s1110
        %v1112 = vmul.f32 %v815, %v1111
        %v1113 = vmul.f32 %v816, %v1111
        %v1114 = vmul.f32 %v817, %v1111
        %v1118 = vrot.slane %v1112, 2
        %v1119 = vrot.slane %v1113, 2
        %v1120 = vsel %vm1037, %v1118, %v1119
        %v1121 = vrot.slane %v1114, 2
        %v1122 = vsel %vm1037, %v1119, %v1121
        %v1125 = vadd.f32 %v1108, %v1120
        %v1126 = vadd.f32 %v1109, %v1122
        %s1127 = sld [smem:[#allocation4 + $0x9]]
        %v1128 = vstv %s1127
        %v1129 = vmul.f32 %v1004, %v1128
        %v1130 = vmul.f32 %v1005, %v1128
        %v1131 = vadd.f32 %v1125, %v1129
        %v1132 = vadd.f32 %v1126, %v1130
        %s1133 = sld [smem:[#allocation4 + $0xa]]
        %v1134 = vstv %s1133
        %v1135 = vmul.f32 %v1004, %v1134
        %v1136 = vmul.f32 %v1005, %v1134
        %v1137 = vmul.f32 %v1006, %v1134
        %v1141 = vrot.slane %v1135, 1
        %v1142 = vrot.slane %v1136, 1
        %v1143 = vsel %vm1019, %v1141, %v1142
        %v1144 = vrot.slane %v1137, 1
        %v1145 = vsel %vm1019, %v1142, %v1144
        %v1148 = vadd.f32 %v1131, %v1143
        %v1149 = vadd.f32 %v1132, %v1145
        %s1150 = sld [smem:[#allocation4 + $0xb]]
        %v1151 = vstv %s1150
        %v1152 = vmul.f32 %v1004, %v1151
        %v1153 = vmul.f32 %v1005, %v1151
        %v1154 = vmul.f32 %v1006, %v1151
        %v1158 = vrot.slane %v1152, 2
        %v1159 = vrot.slane %v1153, 2
        %v1160 = vsel %vm1037, %v1158, %v1159
        %v1161 = vrot.slane %v1154, 2
        %v1162 = vsel %vm1037, %v1159, %v1161
        %v1165 = vadd.f32 %v1148, %v1160
        %v1166 = vadd.f32 %v1149, %v1162
        %s1167 = sld [smem:[#allocation4 + $0xc]]
        %v1168 = vstv %s1167
        %v1169 = vmul.f32 %v437, %v1168
        %v1170 = vmul.f32 %v438, %v1168
        %s1171 = sld [smem:[#allocation4 + $0xd]]
        %v1172 = vstv %s1171
        %v1173 = vmul.f32 %v437, %v1172
        %v1174 = vmul.f32 %v438, %v1172
        %v1175 = vmul.f32 %v439, %v1172
        %v1179 = vrot.slane %v1173, 1
        %v1180 = vrot.slane %v1174, 1
        %v1181 = vsel %vm1019, %v1179, %v1180
        %v1182 = vrot.slane %v1175, 1
        %v1183 = vsel %vm1019, %v1180, %v1182
        %v1186 = vadd.f32 %v1169, %v1181
        %v1187 = vadd.f32 %v1170, %v1183
        %s1188 = sld [smem:[#allocation4 + $0xe]]
        %v1189 = vstv %s1188
        %v1190 = vmul.f32 %v437, %v1189
        %v1191 = vmul.f32 %v438, %v1189
        %v1192 = vmul.f32 %v439, %v1189
        %v1196 = vrot.slane %v1190, 2
        %v1197 = vrot.slane %v1191, 2
        %v1198 = vsel %vm1037, %v1196, %v1197
        %v1199 = vrot.slane %v1192, 2
        %v1200 = vsel %vm1037, %v1197, %v1199
        %v1203 = vadd.f32 %v1186, %v1198
        %v1204 = vadd.f32 %v1187, %v1200
        %s1205 = sld [smem:[#allocation4 + $0xf]]
        %v1206 = vstv %s1205
        %v1207 = vmul.f32 %v626, %v1206
        %v1208 = vmul.f32 %v627, %v1206
        %v1209 = vadd.f32 %v1203, %v1207
        %v1210 = vadd.f32 %v1204, %v1208
        %s1211 = sld [smem:[#allocation4 + $0x10]]
        %v1212 = vstv %s1211
        %v1213 = vmul.f32 %v626, %v1212
        %v1214 = vmul.f32 %v627, %v1212
        %v1215 = vmul.f32 %v628, %v1212
        %v1219 = vrot.slane %v1213, 1
        %v1220 = vrot.slane %v1214, 1
        %v1221 = vsel %vm1019, %v1219, %v1220
        %v1222 = vrot.slane %v1215, 1
        %v1223 = vsel %vm1019, %v1220, %v1222
        %v1226 = vadd.f32 %v1209, %v1221
        %v1227 = vadd.f32 %v1210, %v1223
        %s1228 = sld [smem:[#allocation4 + $0x11]]
        %v1229 = vstv %s1228
        %v1230 = vmul.f32 %v626, %v1229
        %v1231 = vmul.f32 %v627, %v1229
        %v1232 = vmul.f32 %v628, %v1229
        %v1236 = vrot.slane %v1230, 2
        %v1237 = vrot.slane %v1231, 2
        %v1238 = vsel %vm1037, %v1236, %v1237
        %v1239 = vrot.slane %v1232, 2
        %v1240 = vsel %vm1037, %v1237, %v1239
        %v1243 = vadd.f32 %v1226, %v1238
        %v1244 = vadd.f32 %v1227, %v1240
        %s1245 = sld [smem:[#allocation4 + $0x12]]
        %v1246 = vstv %s1245
        %v1247 = vmul.f32 %v815, %v1246
        %v1248 = vmul.f32 %v816, %v1246
        %v1249 = vadd.f32 %v1243, %v1247
        %v1250 = vadd.f32 %v1244, %v1248
        %s1251 = sld [smem:[#allocation4 + $0x13]]
        %v1252 = vstv %s1251
        %v1253 = vmul.f32 %v815, %v1252
        %v1254 = vmul.f32 %v816, %v1252
        %v1255 = vmul.f32 %v817, %v1252
        %v1259 = vrot.slane %v1253, 1
        %v1260 = vrot.slane %v1254, 1
        %v1261 = vsel %vm1019, %v1259, %v1260
        %v1262 = vrot.slane %v1255, 1
        %v1263 = vsel %vm1019, %v1260, %v1262
        %v1266 = vadd.f32 %v1249, %v1261
        %v1267 = vadd.f32 %v1250, %v1263
        %s1268 = sld [smem:[#allocation4 + $0x14]]
        %v1269 = vstv %s1268
        %v1270 = vmul.f32 %v815, %v1269
        %v1271 = vmul.f32 %v816, %v1269
        %v1272 = vmul.f32 %v817, %v1269
        %v1276 = vrot.slane %v1270, 2
        %v1277 = vrot.slane %v1271, 2
        %v1278 = vsel %vm1037, %v1276, %v1277
        %v1279 = vrot.slane %v1272, 2
        %v1280 = vsel %vm1037, %v1277, %v1279
        %v1283 = vadd.f32 %v1266, %v1278
        %v1284 = vadd.f32 %v1267, %v1280
        %s1285 = sld [smem:[#allocation4 + $0x15]]
        %v1286 = vstv %s1285
        %v1287 = vmul.f32 %v1004, %v1286
        %v1288 = vmul.f32 %v1005, %v1286
        %v1289 = vadd.f32 %v1283, %v1287
        %v1290 = vadd.f32 %v1284, %v1288
        %s1291 = sld [smem:[#allocation4 + $0x16]]
        %v1292 = vstv %s1291
        %v1293 = vmul.f32 %v1004, %v1292
        %v1294 = vmul.f32 %v1005, %v1292
        %v1295 = vmul.f32 %v1006, %v1292
        %v1299 = vrot.slane %v1293, 1
        %v1300 = vrot.slane %v1294, 1
        %v1301 = vsel %vm1019, %v1299, %v1300
        %v1302 = vrot.slane %v1295, 1
        %v1303 = vsel %vm1019, %v1300, %v1302
        %v1306 = vadd.f32 %v1289, %v1301
        %v1307 = vadd.f32 %v1290, %v1303
        %s1308 = sld [smem:[#allocation4 + $0x17]]
        %v1309 = vstv %s1308
        %v1310 = vmul.f32 %v1004, %v1309
        %v1311 = vmul.f32 %v1005, %v1309
        %v1312 = vmul.f32 %v1006, %v1309
        %v1316 = vrot.slane %v1310, 2
        %v1317 = vrot.slane %v1311, 2
        %v1318 = vsel %vm1037, %v1316, %v1317
        %v1319 = vrot.slane %v1312, 2
        %v1320 = vsel %vm1037, %v1317, %v1319
        %v1323 = vadd.f32 %v1306, %v1318
        %v1324 = vadd.f32 %v1307, %v1320
        %s1325 = sld [smem:[#allocation4 + $0x18]]
        %v1326 = vstv %s1325
        %v1327 = vmul.f32 %v437, %v1326
        %v1328 = vmul.f32 %v438, %v1326
        %s1329 = sld [smem:[#allocation4 + $0x19]]
        %v1330 = vstv %s1329
        %v1331 = vmul.f32 %v437, %v1330
        %v1332 = vmul.f32 %v438, %v1330
        %v1333 = vmul.f32 %v439, %v1330
        %v1337 = vrot.slane %v1331, 1
        %v1338 = vrot.slane %v1332, 1
        %v1339 = vsel %vm1019, %v1337, %v1338
        %v1340 = vrot.slane %v1333, 1
        %v1341 = vsel %vm1019, %v1338, %v1340
        %v1344 = vadd.f32 %v1327, %v1339
        %v1345 = vadd.f32 %v1328, %v1341
        %s1346 = sld [smem:[#allocation4 + $0x1a]]
        %v1347 = vstv %s1346
        %v1348 = vmul.f32 %v437, %v1347
        %v1349 = vmul.f32 %v438, %v1347
        %v1350 = vmul.f32 %v439, %v1347
        %v1354 = vrot.slane %v1348, 2
        %v1355 = vrot.slane %v1349, 2
        %v1356 = vsel %vm1037, %v1354, %v1355
        %v1357 = vrot.slane %v1350, 2
        %v1358 = vsel %vm1037, %v1355, %v1357
        %v1361 = vadd.f32 %v1344, %v1356
        %v1362 = vadd.f32 %v1345, %v1358
        %s1363 = sld [smem:[#allocation4 + $0x1b]]
        %v1364 = vstv %s1363
        %v1365 = vmul.f32 %v626, %v1364
        %v1366 = vmul.f32 %v627, %v1364
        %v1367 = vadd.f32 %v1361, %v1365
        %v1368 = vadd.f32 %v1362, %v1366
        %s1369 = sld [smem:[#allocation4 + $0x1c]]
        %v1370 = vstv %s1369
        %v1371 = vmul.f32 %v626, %v1370
        %v1372 = vmul.f32 %v627, %v1370
        %v1373 = vmul.f32 %v628, %v1370
        %v1377 = vrot.slane %v1371, 1
        %v1378 = vrot.slane %v1372, 1
        %v1379 = vsel %vm1019, %v1377, %v1378
        %v1380 = vrot.slane %v1373, 1
        %v1381 = vsel %vm1019, %v1378, %v1380
        %v1384 = vadd.f32 %v1367, %v1379
        %v1385 = vadd.f32 %v1368, %v1381
        %s1386 = sld [smem:[#allocation4 + $0x1d]]
        %v1387 = vstv %s1386
        %v1388 = vmul.f32 %v626, %v1387
        %v1389 = vmul.f32 %v627, %v1387
        %v1390 = vmul.f32 %v628, %v1387
        %v1394 = vrot.slane %v1388, 2
        %v1395 = vrot.slane %v1389, 2
        %v1396 = vsel %vm1037, %v1394, %v1395
        %v1397 = vrot.slane %v1390, 2
        %v1398 = vsel %vm1037, %v1395, %v1397
        %v1401 = vadd.f32 %v1384, %v1396
        %v1402 = vadd.f32 %v1385, %v1398
        %s1403 = sld [smem:[#allocation4 + $0x1e]]
        %v1404 = vstv %s1403
        %v1405 = vmul.f32 %v815, %v1404
        %v1406 = vmul.f32 %v816, %v1404
        %v1407 = vadd.f32 %v1401, %v1405
        %v1408 = vadd.f32 %v1402, %v1406
        %s1409 = sld [smem:[#allocation4 + $0x1f]]
        %v1410 = vstv %s1409
        %v1411 = vmul.f32 %v815, %v1410
        %v1412 = vmul.f32 %v816, %v1410
        %v1413 = vmul.f32 %v817, %v1410
        %v1417 = vrot.slane %v1411, 1
        %v1418 = vrot.slane %v1412, 1
        %v1419 = vsel %vm1019, %v1417, %v1418
        %v1420 = vrot.slane %v1413, 1
        %v1421 = vsel %vm1019, %v1418, %v1420
        %v1424 = vadd.f32 %v1407, %v1419
        %v1425 = vadd.f32 %v1408, %v1421
        %s1426 = sld [smem:[#allocation4 + $0x20]]
        %v1427 = vstv %s1426
        %v1428 = vmul.f32 %v815, %v1427
        %v1429 = vmul.f32 %v816, %v1427
        %v1430 = vmul.f32 %v817, %v1427
        %v1434 = vrot.slane %v1428, 2
        %v1435 = vrot.slane %v1429, 2
        %v1436 = vsel %vm1037, %v1434, %v1435
        %v1437 = vrot.slane %v1430, 2
        %v1438 = vsel %vm1037, %v1435, %v1437
        %v1441 = vadd.f32 %v1424, %v1436
        %v1442 = vadd.f32 %v1425, %v1438
        %s1443 = sld [smem:[#allocation4 + $0x21]]
        %v1444 = vstv %s1443
        %v1445 = vmul.f32 %v1004, %v1444
        %v1446 = vmul.f32 %v1005, %v1444
        %v1447 = vadd.f32 %v1441, %v1445
        %v1448 = vadd.f32 %v1442, %v1446
        %s1449 = sld [smem:[#allocation4 + $0x22]]
        %v1450 = vstv %s1449
        %v1451 = vmul.f32 %v1004, %v1450
        %v1452 = vmul.f32 %v1005, %v1450
        %v1453 = vmul.f32 %v1006, %v1450
        %v1457 = vrot.slane %v1451, 1
        %v1458 = vrot.slane %v1452, 1
        %v1459 = vsel %vm1019, %v1457, %v1458
        %v1460 = vrot.slane %v1453, 1
        %v1461 = vsel %vm1019, %v1458, %v1460
        %v1464 = vadd.f32 %v1447, %v1459
        %v1465 = vadd.f32 %v1448, %v1461
        %s1466 = sld [smem:[#allocation4 + $0x23]]
        %v1467 = vstv %s1466
        %v1468 = vmul.f32 %v1004, %v1467
        %v1469 = vmul.f32 %v1005, %v1467
        %v1470 = vmul.f32 %v1006, %v1467
        %v1474 = vrot.slane %v1468, 2
        %v1475 = vrot.slane %v1469, 2
        %v1476 = vsel %vm1037, %v1474, %v1475
        %v1477 = vrot.slane %v1470, 2
        %v1478 = vsel %vm1037, %v1475, %v1477
        %v1481 = vadd.f32 %v1464, %v1476
        %v1482 = vadd.f32 %v1465, %v1478
        %s1483 = sld [smem:[#allocation4 + $0x24]]
        %v1484 = vstv %s1483
        %v1485 = vmul.f32 %v437, %v1484
        %v1486 = vmul.f32 %v438, %v1484
        %s1487 = sld [smem:[#allocation4 + $0x25]]
        %v1488 = vstv %s1487
        %v1489 = vmul.f32 %v437, %v1488
        %v1490 = vmul.f32 %v438, %v1488
        %v1491 = vmul.f32 %v439, %v1488
        %v1495 = vrot.slane %v1489, 1
        %v1496 = vrot.slane %v1490, 1
        %v1497 = vsel %vm1019, %v1495, %v1496
        %v1498 = vrot.slane %v1491, 1
        %v1499 = vsel %vm1019, %v1496, %v1498
        %v1502 = vadd.f32 %v1485, %v1497
        %v1503 = vadd.f32 %v1486, %v1499
        %s1504 = sld [smem:[#allocation4 + $0x26]]
        %v1505 = vstv %s1504
        %v1506 = vmul.f32 %v437, %v1505
        %v1507 = vmul.f32 %v438, %v1505
        %v1508 = vmul.f32 %v439, %v1505
        %v1512 = vrot.slane %v1506, 2
        %v1513 = vrot.slane %v1507, 2
        %v1514 = vsel %vm1037, %v1512, %v1513
        %v1515 = vrot.slane %v1508, 2
        %v1516 = vsel %vm1037, %v1513, %v1515
        %v1519 = vadd.f32 %v1502, %v1514
        %v1520 = vadd.f32 %v1503, %v1516
        %s1521 = sld [smem:[#allocation4 + $0x27]]
        %v1522 = vstv %s1521
        %v1523 = vmul.f32 %v626, %v1522
        %v1524 = vmul.f32 %v627, %v1522
        %v1525 = vadd.f32 %v1519, %v1523
        %v1526 = vadd.f32 %v1520, %v1524
        %s1527 = sld [smem:[#allocation4 + $0x28]]
        %v1528 = vstv %s1527
        %v1529 = vmul.f32 %v626, %v1528
        %v1530 = vmul.f32 %v627, %v1528
        %v1531 = vmul.f32 %v628, %v1528
        %v1535 = vrot.slane %v1529, 1
        %v1536 = vrot.slane %v1530, 1
        %v1537 = vsel %vm1019, %v1535, %v1536
        %v1538 = vrot.slane %v1531, 1
        %v1539 = vsel %vm1019, %v1536, %v1538
        %v1542 = vadd.f32 %v1525, %v1537
        %v1543 = vadd.f32 %v1526, %v1539
        %s1544 = sld [smem:[#allocation4 + $0x29]]
        %v1545 = vstv %s1544
        %v1546 = vmul.f32 %v626, %v1545
        %v1547 = vmul.f32 %v627, %v1545
        %v1548 = vmul.f32 %v628, %v1545
        %v1552 = vrot.slane %v1546, 2
        %v1553 = vrot.slane %v1547, 2
        %v1554 = vsel %vm1037, %v1552, %v1553
        %v1555 = vrot.slane %v1548, 2
        %v1556 = vsel %vm1037, %v1553, %v1555
        %v1559 = vadd.f32 %v1542, %v1554
        %v1560 = vadd.f32 %v1543, %v1556
        %s1561 = sld [smem:[#allocation4 + $0x2a]]
        %v1562 = vstv %s1561
        %v1563 = vmul.f32 %v815, %v1562
        %v1564 = vmul.f32 %v816, %v1562
        %v1565 = vadd.f32 %v1559, %v1563
        %v1566 = vadd.f32 %v1560, %v1564
        %s1567 = sld [smem:[#allocation4 + $0x2b]]
        %v1568 = vstv %s1567
        %v1569 = vmul.f32 %v815, %v1568
        %v1570 = vmul.f32 %v816, %v1568
        %v1571 = vmul.f32 %v817, %v1568
        %v1575 = vrot.slane %v1569, 1
        %v1576 = vrot.slane %v1570, 1
        %v1577 = vsel %vm1019, %v1575, %v1576
        %v1578 = vrot.slane %v1571, 1
        %v1579 = vsel %vm1019, %v1576, %v1578
        %v1582 = vadd.f32 %v1565, %v1577
        %v1583 = vadd.f32 %v1566, %v1579
        %s1584 = sld [smem:[#allocation4 + $0x2c]]
        %v1585 = vstv %s1584
        %v1586 = vmul.f32 %v815, %v1585
        %v1587 = vmul.f32 %v816, %v1585
        %v1588 = vmul.f32 %v817, %v1585
        %v1592 = vrot.slane %v1586, 2
        %v1593 = vrot.slane %v1587, 2
        %v1594 = vsel %vm1037, %v1592, %v1593
        %v1595 = vrot.slane %v1588, 2
        %v1596 = vsel %vm1037, %v1593, %v1595
        %v1599 = vadd.f32 %v1582, %v1594
        %v1600 = vadd.f32 %v1583, %v1596
        %s1601 = sld [smem:[#allocation4 + $0x2d]]
        %v1602 = vstv %s1601
        %v1603 = vmul.f32 %v1004, %v1602
        %v1604 = vmul.f32 %v1005, %v1602
        %v1605 = vadd.f32 %v1599, %v1603
        %v1606 = vadd.f32 %v1600, %v1604
        %s1607 = sld [smem:[#allocation4 + $0x2e]]
        %v1608 = vstv %s1607
        %v1609 = vmul.f32 %v1004, %v1608
        %v1610 = vmul.f32 %v1005, %v1608
        %v1611 = vmul.f32 %v1006, %v1608
        %v1615 = vrot.slane %v1609, 1
        %v1616 = vrot.slane %v1610, 1
        %v1617 = vsel %vm1019, %v1615, %v1616
        %v1618 = vrot.slane %v1611, 1
        %v1619 = vsel %vm1019, %v1616, %v1618
        %v1622 = vadd.f32 %v1605, %v1617
        %v1623 = vadd.f32 %v1606, %v1619
        %s1624 = sld [smem:[#allocation4 + $0x2f]]
        %v1625 = vstv %s1624
        %v1626 = vmul.f32 %v1004, %v1625
        %v1627 = vmul.f32 %v1005, %v1625
        %v1628 = vmul.f32 %v1006, %v1625
        %v1632 = vrot.slane %v1626, 2
        %v1633 = vrot.slane %v1627, 2
        %v1634 = vsel %vm1037, %v1632, %v1633
        %v1635 = vrot.slane %v1628, 2
        %v1636 = vsel %vm1037, %v1633, %v1635
        %v1639 = vadd.f32 %v1622, %v1634
        %v1640 = vadd.f32 %v1623, %v1636
        %vm1641 = vcmask 130048
        %1642 = vst.msk [vmem:[%s231] sm:$0xff] %vm1641, %v1165
        %1643 = vst.msk [vmem:[%s231 + $0x8] sm:$0xff] %vm1641, %v1166
        %1644 = vst.msk [vmem:[%s231 + $0x10] sm:$0xff] %vm1641, %v1323
        %1645 = vst.msk [vmem:[%s231 + $0x18] sm:$0xff] %vm1641, %v1324
        %1646 = vst.msk [vmem:[%s231 + $0x20] sm:$0xff] %vm1641, %v1481
        %1647 = vst.msk [vmem:[%s231 + $0x28] sm:$0xff] %vm1641, %v1482
        %1648 = vst.msk [vmem:[%s231 + $0x30] sm:$0xff] %vm1641, %v1639
        %1649 = vst.msk [vmem:[%s231 + $0x38] sm:$0xff] %vm1641, %v1640
        %v1650 = vsel %vm1641, %v1165, 0.0
        %1651 = vadd.xlane.f32.xlu0 %v1650
        %v1652 = vpop.xlane.xlu0 %1651
        %v1653 = vsel %vm1641, %v1166, 0.0
        %1654 = vadd.xlane.f32.xlu0 %v1653
        %v1655 = vpop.xlane.xlu0 %1654
        %v1656 = vsel %vm1641, %v1323, 0.0
        %1657 = vadd.xlane.f32.xlu0 %v1656
        %v1658 = vpop.xlane.xlu0 %1657
        %v1659 = vsel %vm1641, %v1324, 0.0
        %1660 = vadd.xlane.f32.xlu0 %v1659
        %v1661 = vpop.xlane.xlu0 %1660
        %v1662 = vsel %vm1641, %v1481, 0.0
        %1663 = vadd.xlane.f32.xlu0 %v1662
        %v1664 = vpop.xlane.xlu0 %1663
        %v1665 = vsel %vm1641, %v1482, 0.0
        %1666 = vadd.xlane.f32.xlu0 %v1665
        %v1667 = vpop.xlane.xlu0 %1666
        %v1668 = vsel %vm1641, %v1639, 0.0
        %1669 = vadd.xlane.f32.xlu0 %v1668
        %v1670 = vpop.xlane.xlu0 %1669
        %v1671 = vsel %vm1641, %v1640, 0.0
        %1672 = vadd.xlane.f32.xlu0 %v1671
        %v1673 = vpop.xlane.xlu0 %1672
        %v1682 = vlaneseq
        %v1683 = vand.u32 %v1682, 127
        %v1684 = vperm.slane %v1652, %v1683
        %v1685 = vadd.s32 %v1683, 4294967288
        %v1686 = vperm.slane %v1655, %v1685
        %vm1687 = vcmask 130112
        %v1688 = vsel %vm1687, %v1686, %v1684
        %v1689 = vperm.slane %v1658, %v1683
        %v1690 = vperm.slane %v1661, %v1685
        %v1691 = vsel %vm1687, %v1690, %v1689
        %v1692 = vperm.slane %v1664, %v1683
        %v1693 = vperm.slane %v1667, %v1685
        %v1694 = vsel %vm1687, %v1693, %v1692
        %v1695 = vperm.slane %v1670, %v1683
        %v1696 = vperm.slane %v1673, %v1685
        %v1697 = vsel %vm1687, %v1696, %v1695
        %vm1698 = vcmask 1041409
        %v1699 = vsel %vm1698, %v1691, %v1688
        %vm1700 = vcmask 1042434
        %v1701 = vsel %vm1700, %v1694, %v1699
        %vm1702 = vcmask 1043459
        %v1703 = vsel %vm1702, %v1697, %v1701
        %vm1705 = vcmask 125952
        %v1706 = vsel %vm1705, %v1703, 0.0
        %1707 = vadd.xlane.f32.xlu0 %v1706
        %v1708 = vpop.xlane.xlu0 %1707
        %v1709 = vmul.f32 %v1165, %v1165
        %v1710 = vmul.f32 %v1166, %v1166
        %v1711 = vmul.f32 %v1323, %v1323
        %v1712 = vmul.f32 %v1324, %v1324
        %v1713 = vmul.f32 %v1481, %v1481
        %v1714 = vmul.f32 %v1482, %v1482
        %v1715 = vmul.f32 %v1639, %v1639
        %v1716 = vmul.f32 %v1640, %v1640
        %v1717 = vsel %vm1641, %v1709, 0.0
        %1718 = vadd.xlane.f32.xlu0 %v1717
        %v1719 = vpop.xlane.xlu0 %1718
        %v1720 = vsel %vm1641, %v1710, 0.0
        %1721 = vadd.xlane.f32.xlu0 %v1720
        %v1722 = vpop.xlane.xlu0 %1721
        %v1723 = vsel %vm1641, %v1711, 0.0
        %1724 = vadd.xlane.f32.xlu0 %v1723
        %v1725 = vpop.xlane.xlu0 %1724
        %v1726 = vsel %vm1641, %v1712, 0.0
        %1727 = vadd.xlane.f32.xlu0 %v1726
        %v1728 = vpop.xlane.xlu0 %1727
        %v1729 = vsel %vm1641, %v1713, 0.0
        %1730 = vadd.xlane.f32.xlu0 %v1729
        %v1731 = vpop.xlane.xlu0 %1730
        %v1732 = vsel %vm1641, %v1714, 0.0
        %1733 = vadd.xlane.f32.xlu0 %v1732
        %v1734 = vpop.xlane.xlu0 %1733
        %v1735 = vsel %vm1641, %v1715, 0.0
        %1736 = vadd.xlane.f32.xlu0 %v1735
        %v1737 = vpop.xlane.xlu0 %1736
        %v1738 = vsel %vm1641, %v1716, 0.0
        %1739 = vadd.xlane.f32.xlu0 %v1738
        %v1740 = vpop.xlane.xlu0 %1739
        %v1749 = vperm.slane %v1719, %v1683
        %v1750 = vperm.slane %v1722, %v1685
        %v1751 = vsel %vm1687, %v1750, %v1749
        %v1752 = vperm.slane %v1725, %v1683
        %v1753 = vperm.slane %v1728, %v1685
        %v1754 = vsel %vm1687, %v1753, %v1752
        %v1755 = vperm.slane %v1731, %v1683
        %v1756 = vperm.slane %v1734, %v1685
        %v1757 = vsel %vm1687, %v1756, %v1755
        %v1758 = vperm.slane %v1737, %v1683
        %v1759 = vperm.slane %v1740, %v1685
        %v1760 = vsel %vm1687, %v1759, %v1758
        %v1761 = vsel %vm1698, %v1754, %v1751
        %v1762 = vsel %vm1700, %v1757, %v1761
        %v1763 = vsel %vm1702, %v1760, %v1762
        %v1765 = vsel %vm1705, %v1763, 0.0
        %1766 = vadd.xlane.f32.xlu0 %v1765
        %v1767 = vpop.xlane.xlu0 %1766
        %vm1768 = vcmask 7168
        %v1769 = vsel %vm1768, %v1708, %v1767
        %vm1770 = vcmask 11264
        %1771 = vst.msk [vmem:[%s235] sm:$0xf] %vm1770, %v1769
        %p1772 = scmp.lt.s32.totalorder %s18, 1
        %s1773 = scalar_select %p1772, %s18, 1
        %s1774 = smul.addr %s1773, 8
        %s1775 = smul.addr %s1774, 8
        %s1776 = scalar_lea.vmem %s3, %s1775
        %p1777 = scmp.lt.s32.totalorder %s18, 1
        %s1778 = scalar_select %p1777, %s18, 1
        %s1779 = smul.addr %s1778, 4
        %s1780 = scalar_lea.vmem %s4, %s1779
        // Predicated region
        $region41: #{double_conv_striped.2} parent=31 // pred_check
          %p1781 = pneg %p104
        $region42: #{double_conv_striped.2} parent=31 // pred_check_branch
          %1783 = sbr.rel (%p1781) target = $region44
        $region43: #{double_conv_striped.2} parent=31 // pred_region
          _
        $region44: #{double_conv_striped.2} parent=31 // pred_fallthru
          _
        // Predicated region
        $region45: #{double_conv_striped.2} parent=31 // pred_check
          %p1784 = pneg %p130
        $region46: #{double_conv_striped.2} parent=31 // pred_check_branch
          %1786 = sbr.rel (%p1784) target = $region48
        $region47: #{double_conv_striped.2} parent=31 // pred_region
          _
        $region48: #{double_conv_striped.2} parent=31 // pred_fallthru
          _
      $region32: #{double_conv_striped.2} parent=5 // pred_fallthru
        _
      %p1787 = scmp.le.s32.totalorder 2, %s13
      // Predicated region
      $region49: #{double_conv_striped.2} parent=5 // pred_check
        %p1788 = pneg %p1787
      $region50: #{double_conv_striped.2} parent=5 // pred_check_branch
        %1790 = sbr.rel (%p1788) target = $region52
      $region51: #{double_conv_striped.2} parent=5 // pred_region
        %s1791 = ssub.s32 %s13, 2
        // Predicated region
        $region53: #{double_conv_striped.2} parent=51 // pred_check
          %p1792 = pneg %p110
        $region54: #{double_conv_striped.2} parent=51 // pred_check_branch
          %1794 = sbr.rel (%p1792) target = $region56
        $region55: #{double_conv_striped.2} parent=51 // pred_region
          %p1795 = scmp.lt.s32.totalorder %s19, 1
          %s1796 = scalar_select %p1795, %s19, 1
          %s1797 = smul.addr %s1796, 8
          %s1798 = smul.addr %s1797, 8
          %s1799 = scalar_lea.vmem %s3, %s1798
        $region56: #{double_conv_striped.2} parent=51 // pred_fallthru
          _
        // Predicated region
        $region57: #{double_conv_striped.2} parent=51 // pred_check
          %p1800 = pneg %p136
        $region58: #{double_conv_striped.2} parent=51 // pred_check_branch
          %1802 = sbr.rel (%p1800) target = $region60
        $region59: #{double_conv_striped.2} parent=51 // pred_region
          %p1803 = scmp.lt.s32.totalorder %s19, 1
          %s1804 = scalar_select %p1803, %s19, 1
          %s1805 = smul.addr %s1804, 4
          %s1806 = scalar_lea.vmem %s4, %s1805
        $region60: #{double_conv_striped.2} parent=51 // pred_fallthru
          _
      $region52: #{double_conv_striped.2} parent=5 // pred_fallthru
        _
    $region6: #{double_conv_striped.2} parent=1 // loop_footer
      %s17 = sadd.s32 1, %s13
    $region7: #{double_conv_striped.2} parent=1 // loop_footer_branch
      %12 = sbr.rel target = $region3
    $region8: #{double_conv_striped.2} parent=1 // loop_exit
      _
    %1807 = vsyncpa [#allocation3], 1
    %s1808 = scalar_lea.sflag [#allocation3], 1
    %1809 = vsyncpa %s1808, 1
    %1810 = vsyncpa [#allocation5], 1

</llo_original>
